<compile_context>
chip_gen: v6e
topology: v6e:2x2x1
jax: 0.10.0
libtpu: 0.0.40
codegen_flags: <defaults>
</compile_context>

<pallas_src>
import math
import numpy as np
import jax
import jax.numpy as jnp
from jax.experimental import pallas as pl
from jax.experimental.pallas import tpu as pltpu

VMEM_SPEC = pl.BlockSpec(memory_space=pltpu.MemorySpace.VMEM)

# ---- parameter-slab row offsets (matrix sections 8-aligned) ----------------------------------
_WI = 0        # rows   0: 64  GRU input->gates  (64,128)  cols [r | z | n_i | 0]
_WH = 64       # rows  64: 96  GRU hidden->gates (32,128)  cols [r | z | 0   | n_h]
_WAV = 96      # rows  96:160  actor/value head  (64,128)  cols [actor 0:A | value A | 0]
_WHID = 160    # rows 160:192  lin_hidden        (32,32)   in cols 0:32
_WPV = 192     # rows 192:224  [lin_policy|lin_value] (32,64) in cols 0:64
_BGRU = 224    # row  224      fused GRU bias (128)
_BAV = 225     # row  225      actor/value bias (128)
_BHID_PV = 226 # row  226      b_hid cols 0:32, b_pv cols 64:128
_B12 = 227     # row  227      conv1 bias cols 0:32, conv2 bias cols 64:128
_B3 = 228      # row  228      conv3 bias cols 0:64
_SLAB_ROWS = 232


# ---------------------------------------------------------------------------
# The single fused kernel
# ---------------------------------------------------------------------------
def _fused_kernel(xp_ref, h0_ref, w1_ref, w2_ref, w3_ref, slab_ref,
                  out_ref, c1_scr, c2_scr, c23_scr):
    f32, bf16 = jnp.float32, jnp.bfloat16
    B = h0_ref.shape[0]

    # ---- conv1: ONE (B*64, 256) x (256, 32) matmul over wrapper-built im2col patches ----
    bias1 = slab_ref[_B12:_B12 + 1, 0:32].astype(f32)
    c1 = jnp.dot(xp_ref[...], w1_ref[...], preferred_element_type=f32)          # (128, 32)
    c1 = jnp.maximum(c1 + bias1, 0.0)
    # scatter the four (di,dj) planes into the 2x2 space-to-depth layout (bi, bj, b, 4*32)
    for k in range(4):
        c1_scr[:, :, :, k * 32:(k + 1) * 32] = (
            c1[k * 32:(k + 1) * 32, :].reshape(4, 4, B, 32))

    # ---- conv2: 4 accumulated (9B, 128) x (128, 64) matmuls over static s2d windows ----
    bias2 = slab_ref[_B12:_B12 + 1, 64:128].astype(f32)
    parts = []
    for u in range(2):
        for v in range(2):
            win = c1_scr[u:u + 3, v:v + 3, :, :].reshape(9 * B, 128).astype(bf16)
            parts.append(jnp.dot(win, w2_ref[u * 2 + v], preferred_element_type=f32))
    acc2 = (parts[0] + parts[1]) + (parts[2] + parts[3])
    c2_scr[...] = jnp.maximum(acc2 + bias2, 0.0)                                 # rows (pos, b)

    # ---- conv3: repack (pos, b, 64) -> (b, 576), then ONE (B,576) x (576,64) matmul ----
    for p in range(9):
        c23_scr[:, p * 64:(p + 1) * 64] = c2_scr[p * B:(p + 1) * B, :]
    bias3 = slab_ref[_B3:_B3 + 1, 0:64].astype(f32)
    feat = jnp.dot(c23_scr[...].astype(bf16), w3_ref[...], preferred_element_type=f32)
    feat = jnp.maximum(feat + bias3, 0.0)                                        # (B, 64)

    # ---- GRU single step: 2 matmuls, all 4 gate pre-activations packed into 128 lanes ----
    h0 = h0_ref[...]                                                             # (B, 32) f32
    bgru = slab_ref[_BGRU:_BGRU + 1, :].astype(f32)
    y = (jnp.dot(feat.astype(bf16), slab_ref[_WI:_WI + 64, :], preferred_element_type=f32)
         + jnp.dot(h0.astype(bf16), slab_ref[_WH:_WH + 32, :], preferred_element_type=f32)
         + bgru)                                                                 # (B, 128)
    r = jax.nn.sigmoid(y[:, 0:32])
    z = jax.nn.sigmoid(y[:, 32:64])
    n = jnp.tanh(y[:, 64:96] + r * y[:, 96:128])
    h1 = (1.0 - z) * n + z * h0                                                  # (B, 32)

    # ---- heads: lin_hidden -> [lin_policy | lin_value] -> block-diag [actor | value] ----
    bhid = slab_ref[_BHID_PV:_BHID_PV + 1, 0:32].astype(f32)
    bpv = slab_ref[_BHID_PV:_BHID_PV + 1, 64:128].astype(f32)
    bav = slab_ref[_BAV:_BAV + 1, :].astype(f32)
    hh = jnp.maximum(jnp.dot(h1.astype(bf16), slab_ref[_WHID:_WHID + 32, 0:32],
                             preferred_element_type=f32) + bhid, 0.0)            # (B, 32)
    hpv = jnp.maximum(jnp.dot(hh.astype(bf16), slab_ref[_WPV:_WPV + 32, 0:64],
                              preferred_element_type=f32) + bpv, 0.0)            # (B, 64)
    heads = jnp.dot(hpv.astype(bf16), slab_ref[_WAV:_WAV + 64, :],
                    preferred_element_type=f32) + bav                            # (B, 128)
    out_ref[...] = heads
    out_ref[:, 64:96] = h1        # pack h_new into the spare lanes of the single output


def _fused_forward(packed, xpatch, h_prev):
    """Runs the whole model in one pallas_call.  Returns a single (B, 128) f32 slab:
       cols 0:A = policy logits, col A = value, cols 64:96 = new GRU hidden state."""
    B = h_prev.shape[0]
    return pl.pallas_call(
        _fused_kernel,
        out_shape=jax.ShapeDtypeStruct((B, 128), jnp.float32),
        in_specs=[VMEM_SPEC] * 6,
        out_specs=VMEM_SPEC,
        scratch_shapes=[pltpu.VMEM((4, 4, B, 128), jnp.float32),   # conv1 space-to-depth
                        pltpu.VMEM((9 * B, 64), jnp.float32),      # conv2 output (pos, b)
                        pltpu.VMEM((B, 576), jnp.float32)],        # conv3 im2col row per batch
        cost_estimate=pl.CostEstimate(flops=3_600_000, transcendentals=256,
                                      bytes_accessed=300_000),
    )(xpatch, h_prev, packed["w1"], packed["w2"], packed["w3"], packed["slab"])


# ---------------------------------------------------------------------------
# Wrapper glue (layout-only ops) and one-time weight packing
# ---------------------------------------------------------------------------
def obs_to_patches(obs):
    """NCHW (B,C,36,36) -> (128, 256) conv1 im2col patches.
    Rows ordered (di, dj, bi, bj, b) with output spatial (oh,ow) = (2bi+di, 2bj+dj);
    features ordered (a, bb, r, s, c) with kernel offset (kh,kw) = (4a+r, 4bb+s)."""
    B, C, H, W = obs.shape
    x = jnp.transpose(obs, (0, 2, 3, 1))                       # (B, H, W, C)
    xb = x.reshape(B, H // 4, 4, W // 4, 4, C)                 # (b, Bi, r, Bj, s, c)
    xb = jnp.transpose(xb, (0, 1, 3, 2, 4, 5))                 # (b, Bi, Bj, r, s, c)
    pat = jnp.stack([xb[:, a:a + 8, bb:bb + 8] for a in (0, 1) for bb in (0, 1)],
                    axis=3)                                    # (b, oh, ow, ab, r, s, c)
    pat = pat.reshape(B, 4, 2, 4, 2, 4, 4, 4, C)               # (b, bi, di, bj, dj, ab, r, s, c)
    pat = jnp.transpose(pat, (2, 4, 1, 3, 0, 5, 6, 7, 8))      # (di, dj, bi, bj, b, ab, r, s, c)
    return pat.reshape(4 * 16 * B, 64 * C)                     # (128, 256)


def pack_params(p, num_actions=6):
    """Re-layout the 'natural' parameters into kernel-friendly bf16 tensors + one (232,128) slab."""
    f32, bf16 = jnp.float32, jnp.bfloat16
    # conv1 (8,8,C,32) HWIO -> (256,32), rows ordered (a, bb, r, s, c) with kh=4a+r, kw=4bb+s.
    w1 = p["conv1"]["w"]
    C = w1.shape[2]
    w1p = w1.reshape(2, 4, 2, 4, C, 32).transpose(0, 2, 1, 3, 4, 5).reshape(64 * C, 32)
    # conv2 (4,4,32,64) -> 4 space-to-depth blocks (a2,b2), rows (di, dj, c): kh=2a2+di, kw=2b2+dj.
    w2 = p["conv2"]["w"]
    w2b = w2.reshape(2, 2, 2, 2, 32, 64).transpose(0, 2, 1, 3, 4, 5).reshape(4, 128, 64)
    # conv3 (3,3,64,64) -> (576,64), rows (kh, kw, c)  (matches the (pos, c) column layout).
    w3p = p["conv3"]["w"].reshape(576, 64)

    # GRU (torch layout (3H, in), gate order [r, z, n]) -> fused 128-lane gate blocks.
    g = p["gru"]
    wih_t = g["w_ih"].T                                        # (64, 96) cols [r|z|n]
    whh_t = g["w_hh"].T                                        # (32, 96)
    wi_ext = jnp.zeros((64, 128), f32).at[:, 0:96].set(wih_t)
    wh_ext = jnp.zeros((32, 128), f32)
    wh_ext = wh_ext.at[:, 0:64].set(whh_t[:, 0:64]).at[:, 96:128].set(whh_t[:, 64:96])
    b_gru = jnp.zeros((128,), f32)
    b_gru = b_gru.at[0:32].set(g["b_ih"][0:32] + g["b_hh"][0:32])
    b_gru = b_gru.at[32:64].set(g["b_ih"][32:64] + g["b_hh"][32:64])
    b_gru = b_gru.at[64:96].set(g["b_ih"][64:96])
    b_gru = b_gru.at[96:128].set(g["b_hh"][64:96])

    # Heads: concat policy/value trunks; block-diagonal actor/value padded to 128 lanes.
    A = num_actions
    w_pv = jnp.concatenate([p["lin_policy"]["w"], p["lin_value"]["w"]], axis=1)   # (32, 64)
    b_pv = jnp.concatenate([p["lin_policy"]["b"], p["lin_value"]["b"]])           # (64,)
    w_av = jnp.zeros((64, 128), f32)
    w_av = w_av.at[0:32, 0:A].set(p["actor"]["w"])
    w_av = w_av.at[32:64, A:A + 1].set(p["value"]["w"])
    b_av = jnp.zeros((128,), f32).at[0:A].set(p["actor"]["b"]).at[A].set(p["value"]["b"][0])

    slab = jnp.zeros((_SLAB_ROWS, 128), f32)
    slab = slab.at[_WI:_WI + 64, :].set(wi_ext)
    slab = slab.at[_WH:_WH + 32, :].set(wh_ext)
    slab = slab.at[_WAV:_WAV + 64, :].set(w_av)
    slab = slab.at[_WHID:_WHID + 32, 0:32].set(p["lin_hidden"]["w"])
    slab = slab.at[_WPV:_WPV + 32, 0:64].set(w_pv)
    slab = slab.at[_BGRU, :].set(b_gru)
    slab = slab.at[_BAV, :].set(b_av)
    slab = slab.at[_BHID_PV, 0:32].set(p["lin_hidden"]["b"])
    slab = slab.at[_BHID_PV, 64:128].set(b_pv)
    slab = slab.at[_B12, 0:32].set(p["conv1"]["b"])
    slab = slab.at[_B12, 64:128].set(p["conv2"]["b"])
    slab = slab.at[_B3, 0:64].set(p["conv3"]["b"])

    return dict(w1=w1p.astype(bf16), w2=w2b.astype(bf16), w3=w3p.astype(bf16),
                slab=slab.astype(bf16))


def forward(packed, obs, recurrent_cell, num_actions=6):
    """Matches ActorCriticModel.forward for sequence_length == 1 with a GRU layer."""
    xpatch = obs_to_patches(obs).astype(jnp.bfloat16)          # bf16 MXU operands
    hxs = recurrent_cell[0] if isinstance(recurrent_cell, tuple) else recurrent_cell
    h_prev = hxs[0]                                            # (1, B, H) -> (B, H)
    out = _fused_forward(packed, xpatch, h_prev)               # (B, 128)
    logits = out[:, :num_actions]
    value = out[:, num_actions]
    h_new = out[:, 64:96]                                      # packed new hidden state
    return [logits], value, h_new[None, :, :]


# ---------------------------------------------------------------------------
# Pure-JAX reference (independent lax.conv path) for correctness
# ---------------------------------------------------------------------------
def ref_forward(params, obs, recurrent_cell):
    def conv(x, w, b, s):
        y = jax.lax.conv_general_dilated(x, w, (s, s), "VALID",
                                         dimension_numbers=("NCHW", "HWIO", "NCHW"))
        return jnp.maximum(y + b[None, :, None, None], 0.0)

    B = obs.shape[0]
    h = conv(obs, params["conv1"]["w"], params["conv1"]["b"], 4)
    h = conv(h, params["conv2"]["w"], params["conv2"]["b"], 2)
    h = conv(h, params["conv3"]["w"], params["conv3"]["b"], 1)
    h = h.reshape(B, -1)
    hxs = recurrent_cell[0] if isinstance(recurrent_cell, tuple) else recurrent_cell
    h0 = hxs[0]
    g = params["gru"]
    H = h0.shape[-1]
    gi = h @ g["w_ih"].T + g["b_ih"]
    gh = h0 @ g["w_hh"].T + g["b_hh"]
    r = jax.nn.sigmoid(gi[:, :H] + gh[:, :H])
    z = jax.nn.sigmoid(gi[:, H:2 * H] + gh[:, H:2 * H])
    n = jnp.tanh(gi[:, 2 * H:] + r * gh[:, 2 * H:])
    hn = (1.0 - z) * n + z * h0
    hh = jnp.maximum(hn @ params["lin_hidden"]["w"] + params["lin_hidden"]["b"], 0.0)
    hp = jnp.maximum(hh @ params["lin_policy"]["w"] + params["lin_policy"]["b"], 0.0)
    hv = jnp.maximum(hh @ params["lin_value"]["w"] + params["lin_value"]["b"], 0.0)
    logits = hp @ params["actor"]["w"] + params["actor"]["b"]
    value = (hv @ params["value"]["w"] + params["value"]["b"]).reshape(-1)
    return [logits], value, hn[None, :, :]


# ---------------------------------------------------------------------------
# Deterministic parameter init (mirrors the module's shapes / orthogonal gains)
# ---------------------------------------------------------------------------
def init_params(key, obs_shape=(4, 36, 36), hidden_size=32, gru_hidden=32, num_actions=6):
    g2 = math.sqrt(2.0)
    orth = lambda k, shape, gain: jax.nn.initializers.orthogonal(scale=gain)(k, shape, jnp.float32)
    unif = lambda k, n: jax.random.uniform(k, (n,), jnp.float32, -0.05, 0.05)
    ks = jax.random.split(key, 20)
    C = obs_shape[0]
    conv_out = 64 * 1 * 1    # 36x36 trunk ends at 1x1 spatial
    return {
        "conv1": {"w": orth(ks[0], (8, 8, C, 32), g2),  "b": unif(ks[1], 32)},
        "conv2": {"w": orth(ks[2], (4, 4, 32, 64), g2), "b": unif(ks[3], 64)},
        "conv3": {"w": orth(ks[4], (3, 3, 64, 64), g2), "b": unif(ks[5], 64)},
        "gru": {
            "w_ih": orth(ks[6], (3 * gru_hidden, conv_out), g2),
            "w_hh": orth(ks[7], (3 * gru_hidden, gru_hidden), g2),
            "b_ih": jnp.zeros((3 * gru_hidden,), jnp.float32),   # nn.init.constant_(bias, 0)
            "b_hh": jnp.zeros((3 * gru_hidden,), jnp.float32),
        },
        "lin_hidden": {"w": orth(ks[8], (gru_hidden, hidden_size), g2),   "b": unif(ks[9], hidden_size)},
        "lin_policy": {"w": orth(ks[10], (hidden_size, hidden_size), g2), "b": unif(ks[11], hidden_size)},
        "lin_value":  {"w": orth(ks[12], (hidden_size, hidden_size), g2), "b": unif(ks[13], hidden_size)},
        "actor": {"w": orth(ks[14], (hidden_size, num_actions), math.sqrt(0.01)), "b": unif(ks[15], num_actions)},
        "value": {"w": orth(ks[16], (hidden_size, 1), 1.0), "b": unif(ks[17], 1)},
    }


# ---------------------------------------------------------------------------
if __name__ == "__main__":
    key = jax.random.PRNGKey(0)
    k_p, k_obs, k_h = jax.random.split(key, 3)

    B, C, HW = 2, 4, 36
    GRU_H, HID, A = 32, 32, 6
    params = init_params(k_p, obs_shape=(C, HW, HW), hidden_size=HID,
                         gru_hidden=GRU_H, num_actions=A)
    packed = pack_params(params, num_actions=A)          # one-time weight re-layout

    obs = jax.random.normal(k_obs, (B, C, HW, HW), jnp.float32)
    # init_recurrent_cell_states gives zeros; use a non-zero state to exercise the GRU fully.
    hxs = 0.1 * jax.random.normal(k_h, (1, B, GRU_H), jnp.float32)
    recurrent_cell = (hxs, None)

    fwd = jax.jit(forward, static_argnames=("num_actions",))
    (pi_logits,), value, new_cell = fwd(packed, obs, recurrent_cell, num_actions=A)
    jax.block_until_ready((pi_logits, value, new_cell))

    # correctness check against an independent pure-JAX (lax.conv, f32) path;
    # tolerance loosened because MXU operands are bf16 (accumulation stays f32).
    (ref_logits,), ref_value, ref_cell = ref_forward(params, obs, recurrent_cell)
    np.testing.assert_allclose(np.asarray(pi_logits), np.asarray(ref_logits), rtol=3e-2, atol=3e-2)
    np.testing.assert_allclose(np.asarray(value), np.asarray(ref_value), rtol=3e-2, atol=3e-2)
    np.testing.assert_allclose(np.asarray(new_cell), np.asarray(ref_cell), rtol=3e-2, atol=3e-2)

    assert pi_logits.shape == (B, A) and value.shape == (B,) and new_cell.shape == (1, B, GRU_H)
    print("KERNEL_OK")
</pallas_src>

<mosaic_0001>
module attributes {stable_mosaic.version = 11 : i64} {
  func.func @_fused_kernel(%arg0: memref<128x256xbf16, #tpu.memory_space<vmem>>, %arg1: memref<2x32xf32, #tpu.memory_space<vmem>>, %arg2: memref<256x32xbf16, #tpu.memory_space<vmem>>, %arg3: memref<4x128x64xbf16, #tpu.memory_space<vmem>>, %arg4: memref<576x64xbf16, #tpu.memory_space<vmem>>, %arg5: memref<232x128xbf16, #tpu.memory_space<vmem>>, %arg6: memref<2x128xf32, #tpu.memory_space<vmem>>, %arg7: memref<4x4x2x128xf32, #tpu.memory_space<vmem>>, %arg8: memref<18x64xf32, #tpu.memory_space<vmem>>, %arg9: memref<2x576xf32, #tpu.memory_space<vmem>>) attributes {dimension_semantics = [], scalar_prefetch = 0 : i64, scratch_operands = 3 : i64, tpu.core_type = #tpu.core_type<tc>} {
    %c227 = arith.constant 227 : index
    %c0 = arith.constant 0 : index
    %0 = vector.load %arg5[%c227, %c0] : memref<232x128xbf16, #tpu.memory_space<vmem>>, vector<1x32xbf16>
    %1 = arith.extf %0 : vector<1x32xbf16> to vector<1x32xf32>
    %c0_0 = arith.constant 0 : index
    %c0_1 = arith.constant 0 : index
    %2 = vector.load %arg0[%c0_0, %c0_1] : memref<128x256xbf16, #tpu.memory_space<vmem>>, vector<128x256xbf16>
    %c0_2 = arith.constant 0 : index
    %c0_3 = arith.constant 0 : index
    %3 = vector.load %arg2[%c0_2, %c0_3] : memref<256x32xbf16, #tpu.memory_space<vmem>>, vector<256x32xbf16>
    %cst = arith.constant dense<0.000000e+00> : vector<128x32xf32>
    %4 = tpu.matmul %2, %3, %cst {dimension_numbers = #tpu.dot_dimension_numbers<[1], [0], [0], [1], [0, 0, 1, 1], [], []>} : vector<128x256xbf16>, vector<256x32xbf16>, vector<128x32xf32> -> vector<128x32xf32>
    %5 = vector.broadcast %1 : vector<1x32xf32> to vector<128x32xf32>
    %6 = arith.addf %4, %5 : vector<128x32xf32>
    %cst_4 = arith.constant 0.000000e+00 : f32
    %7 = vector.broadcast %cst_4 : f32 to vector<128x32xf32>
    %8 = arith.maximumf %6, %7 : vector<128x32xf32>
    %9 = vector.extract_strided_slice %8 {offsets = [0, 0], sizes = [32, 32], strides = [1, 1]} : vector<128x32xf32> to vector<32x32xf32>
    %10 = vector.shape_cast %9 : vector<32x32xf32> to vector<4x4x2x32xf32>
    %c0_5 = arith.constant 0 : index
    %c0_6 = arith.constant 0 : index
    %c0_7 = arith.constant 0 : index
    %c0_8 = arith.constant 0 : index
    %11 = vector.load %arg7[%c0_5, %c0_6, %c0_7, %c0_8] : memref<4x4x2x128xf32, #tpu.memory_space<vmem>>, vector<4x4x2x32xf32>
    tpu.vector_store %arg7[%c0_5, %c0_6, %c0_7, %c0_8], %10 {strides = array<i32>} : memref<4x4x2x128xf32, #tpu.memory_space<vmem>>, vector<4x4x2x32xf32>,
    %12 = vector.extract_strided_slice %8 {offsets = [32, 0], sizes = [32, 32], strides = [1, 1]} : vector<128x32xf32> to vector<32x32xf32>
    %13 = vector.shape_cast %12 : vector<32x32xf32> to vector<4x4x2x32xf32>
    %c0_9 = arith.constant 0 : index
    %c0_10 = arith.constant 0 : index
    %c0_11 = arith.constant 0 : index
    %c32 = arith.constant 32 : index
    %14 = vector.load %arg7[%c0_9, %c0_10, %c0_11, %c32] : memref<4x4x2x128xf32, #tpu.memory_space<vmem>>, vector<4x4x2x32xf32>
    tpu.vector_store %arg7[%c0_9, %c0_10, %c0_11, %c32], %13 {strides = array<i32>} : memref<4x4x2x128xf32, #tpu.memory_space<vmem>>, vector<4x4x2x32xf32>,
    %15 = vector.extract_strided_slice %8 {offsets = [64, 0], sizes = [32, 32], strides = [1, 1]} : vector<128x32xf32> to vector<32x32xf32>
    %16 = vector.shape_cast %15 : vector<32x32xf32> to vector<4x4x2x32xf32>
    %c0_12 = arith.constant 0 : index
    %c0_13 = arith.constant 0 : index
    %c0_14 = arith.constant 0 : index
    %c64 = arith.constant 64 : index
    %17 = vector.load %arg7[%c0_12, %c0_13, %c0_14, %c64] : memref<4x4x2x128xf32, #tpu.memory_space<vmem>>, vector<4x4x2x32xf32>
    tpu.vector_store %arg7[%c0_12, %c0_13, %c0_14, %c64], %16 {strides = array<i32>} : memref<4x4x2x128xf32, #tpu.memory_space<vmem>>, vector<4x4x2x32xf32>,
    %18 = vector.extract_strided_slice %8 {offsets = [96, 0], sizes = [32, 32], strides = [1, 1]} : vector<128x32xf32> to vector<32x32xf32>
    %19 = vector.shape_cast %18 : vector<32x32xf32> to vector<4x4x2x32xf32>
    %c0_15 = arith.constant 0 : index
    %c0_16 = arith.constant 0 : index
    %c0_17 = arith.constant 0 : index
    %c96 = arith.constant 96 : index
    %20 = vector.load %arg7[%c0_15, %c0_16, %c0_17, %c96] : memref<4x4x2x128xf32, #tpu.memory_space<vmem>>, vector<4x4x2x32xf32>
    tpu.vector_store %arg7[%c0_15, %c0_16, %c0_17, %c96], %19 {strides = array<i32>} : memref<4x4x2x128xf32, #tpu.memory_space<vmem>>, vector<4x4x2x32xf32>,
    %c227_18 = arith.constant 227 : index
    %c64_19 = arith.constant 64 : index
    %21 = vector.load %arg5[%c227_18, %c64_19] : memref<232x128xbf16, #tpu.memory_space<vmem>>, vector<1x64xbf16>
    %22 = arith.extf %21 : vector<1x64xbf16> to vector<1x64xf32>
    %c0_20 = arith.constant 0 : index
    %c0_21 = arith.constant 0 : index
    %c0_22 = arith.constant 0 : index
    %c0_23 = arith.constant 0 : index
    %23 = vector.load %arg7[%c0_20, %c0_21, %c0_22, %c0_23] : memref<4x4x2x128xf32, #tpu.memory_space<vmem>>, vector<3x3x2x128xf32>
    %24 = vector.shape_cast %23 : vector<3x3x2x128xf32> to vector<18x128xf32>
    %25 = arith.truncf %24 : vector<18x128xf32> to vector<18x128xbf16>
    %c0_24 = arith.constant 0 : index
    %c0_25 = arith.constant 0 : index
    %c0_26 = arith.constant 0 : index
    %26 = vector.load %arg3[%c0_24, %c0_25, %c0_26] : memref<4x128x64xbf16, #tpu.memory_space<vmem>>, vector<1x128x64xbf16>
    %27 = vector.shape_cast %26 : vector<1x128x64xbf16> to vector<128x64xbf16>
    %cst_27 = arith.constant dense<0.000000e+00> : vector<18x64xf32>
    %28 = tpu.matmul %25, %27, %cst_27 {dimension_numbers = #tpu.dot_dimension_numbers<[1], [0], [0], [1], [0, 0, 1, 1], [], []>} : vector<18x128xbf16>, vector<128x64xbf16>, vector<18x64xf32> -> vector<18x64xf32>
    %c0_28 = arith.constant 0 : index
    %c1 = arith.constant 1 : index
    %c0_29 = arith.constant 0 : index
    %c0_30 = arith.constant 0 : index
    %29 = vector.load %arg7[%c0_28, %c1, %c0_29, %c0_30] : memref<4x4x2x128xf32, #tpu.memory_space<vmem>>, vector<3x3x2x128xf32>
    %30 = vector.shape_cast %29 : vector<3x3x2x128xf32> to vector<18x128xf32>
    %31 = arith.truncf %30 : vector<18x128xf32> to vector<18x128xbf16>
    %c1_31 = arith.constant 1 : index
    %c0_32 = arith.constant 0 : index
    %c0_33 = arith.constant 0 : index
    %32 = vector.load %arg3[%c1_31, %c0_32, %c0_33] : memref<4x128x64xbf16, #tpu.memory_space<vmem>>, vector<1x128x64xbf16>
    %33 = vector.shape_cast %32 : vector<1x128x64xbf16> to vector<128x64xbf16>
    %cst_34 = arith.constant dense<0.000000e+00> : vector<18x64xf32>
    %34 = tpu.matmul %31, %33, %cst_34 {dimension_numbers = #tpu.dot_dimension_numbers<[1], [0], [0], [1], [0, 0, 1, 1], [], []>} : vector<18x128xbf16>, vector<128x64xbf16>, vector<18x64xf32> -> vector<18x64xf32>
    %c1_35 = arith.constant 1 : index
    %c0_36 = arith.constant 0 : index
    %c0_37 = arith.constant 0 : index
    %c0_38 = arith.constant 0 : index
    %35 = vector.load %arg7[%c1_35, %c0_36, %c0_37, %c0_38] : memref<4x4x2x128xf32, #tpu.memory_space<vmem>>, vector<3x3x2x128xf32>
    %36 = vector.shape_cast %35 : vector<3x3x2x128xf32> to vector<18x128xf32>
    %37 = arith.truncf %36 : vector<18x128xf32> to vector<18x128xbf16>
    %c2 = arith.constant 2 : index
    %c0_39 = arith.constant 0 : index
    %c0_40 = arith.constant 0 : index
    %38 = vector.load %arg3[%c2, %c0_39, %c0_40] : memref<4x128x64xbf16, #tpu.memory_space<vmem>>, vector<1x128x64xbf16>
    %39 = vector.shape_cast %38 : vector<1x128x64xbf16> to vector<128x64xbf16>
    %cst_41 = arith.constant dense<0.000000e+00> : vector<18x64xf32>
    %40 = tpu.matmul %37, %39, %cst_41 {dimension_numbers = #tpu.dot_dimension_numbers<[1], [0], [0], [1], [0, 0, 1, 1], [], []>} : vector<18x128xbf16>, vector<128x64xbf16>, vector<18x64xf32> -> vector<18x64xf32>
    %c1_42 = arith.constant 1 : index
    %c1_43 = arith.constant 1 : index
    %c0_44 = arith.constant 0 : index
    %c0_45 = arith.constant 0 : index
    %41 = vector.load %arg7[%c1_42, %c1_43, %c0_44, %c0_45] : memref<4x4x2x128xf32, #tpu.memory_space<vmem>>, vector<3x3x2x128xf32>
    %42 = vector.shape_cast %41 : vector<3x3x2x128xf32> to vector<18x128xf32>
    %43 = arith.truncf %42 : vector<18x128xf32> to vector<18x128xbf16>
    %c3 = arith.constant 3 : index
    %c0_46 = arith.constant 0 : index
    %c0_47 = arith.constant 0 : index
    %44 = vector.load %arg3[%c3, %c0_46, %c0_47] : memref<4x128x64xbf16, #tpu.memory_space<vmem>>, vector<1x128x64xbf16>
    %45 = vector.shape_cast %44 : vector<1x128x64xbf16> to vector<128x64xbf16>
    %cst_48 = arith.constant dense<0.000000e+00> : vector<18x64xf32>
    %46 = tpu.matmul %43, %45, %cst_48 {dimension_numbers = #tpu.dot_dimension_numbers<[1], [0], [0], [1], [0, 0, 1, 1], [], []>} : vector<18x128xbf16>, vector<128x64xbf16>, vector<18x64xf32> -> vector<18x64xf32>
    %47 = arith.addf %28, %34 : vector<18x64xf32>
    %48 = arith.addf %40, %46 : vector<18x64xf32>
    %49 = arith.addf %47, %48 : vector<18x64xf32>
    %50 = vector.broadcast %22 : vector<1x64xf32> to vector<18x64xf32>
    %51 = arith.addf %49, %50 : vector<18x64xf32>
    %cst_49 = arith.constant 0.000000e+00 : f32
    %52 = vector.broadcast %cst_49 : f32 to vector<18x64xf32>
    %53 = arith.maximumf %51, %52 : vector<18x64xf32>
    %c0_50 = arith.constant 0 : index
    %c0_51 = arith.constant 0 : index
    %54 = vector.load %arg8[%c0_50, %c0_51] : memref<18x64xf32, #tpu.memory_space<vmem>>, vector<18x64xf32>
    tpu.vector_store %arg8[%c0_50, %c0_51], %53 {strides = array<i32>} : memref<18x64xf32, #tpu.memory_space<vmem>>, vector<18x64xf32>,
    %c0_52 = arith.constant 0 : index
    %c0_53 = arith.constant 0 : index
    %55 = vector.load %arg8[%c0_52, %c0_53] : memref<18x64xf32, #tpu.memory_space<vmem>>, vector<2x64xf32>
    %c0_54 = arith.constant 0 : index
    %c0_55 = arith.constant 0 : index
    %56 = vector.load %arg9[%c0_54, %c0_55] : memref<2x576xf32, #tpu.memory_space<vmem>>, vector<2x64xf32>
    tpu.vector_store %arg9[%c0_54, %c0_55], %55 {strides = array<i32>} : memref<2x576xf32, #tpu.memory_space<vmem>>, vector<2x64xf32>,
    %c2_56 = arith.constant 2 : index
    %c0_57 = arith.constant 0 : index
    %57 = vector.load %arg8[%c2_56, %c0_57] : memref<18x64xf32, #tpu.memory_space<vmem>>, vector<2x64xf32>
    %c0_58 = arith.constant 0 : index
    %c64_59 = arith.constant 64 : index
    %58 = vector.load %arg9[%c0_58, %c64_59] : memref<2x576xf32, #tpu.memory_space<vmem>>, vector<2x64xf32>
    tpu.vector_store %arg9[%c0_58, %c64_59], %57 {strides = array<i32>} : memref<2x576xf32, #tpu.memory_space<vmem>>, vector<2x64xf32>,
    %c4 = arith.constant 4 : index
    %c0_60 = arith.constant 0 : index
    %59 = vector.load %arg8[%c4, %c0_60] : memref<18x64xf32, #tpu.memory_space<vmem>>, vector<2x64xf32>
    %c0_61 = arith.constant 0 : index
    %c128 = arith.constant 128 : index
    %60 = vector.load %arg9[%c0_61, %c128] : memref<2x576xf32, #tpu.memory_space<vmem>>, vector<2x64xf32>
    tpu.vector_store %arg9[%c0_61, %c128], %59 {strides = array<i32>} : memref<2x576xf32, #tpu.memory_space<vmem>>, vector<2x64xf32>,
    %c6 = arith.constant 6 : index
    %c0_62 = arith.constant 0 : index
    %61 = vector.load %arg8[%c6, %c0_62] : memref<18x64xf32, #tpu.memory_space<vmem>>, vector<2x64xf32>
    %c0_63 = arith.constant 0 : index
    %c192 = arith.constant 192 : index
    %62 = vector.load %arg9[%c0_63, %c192] : memref<2x576xf32, #tpu.memory_space<vmem>>, vector<2x64xf32>
    tpu.vector_store %arg9[%c0_63, %c192], %61 {strides = array<i32>} : memref<2x576xf32, #tpu.memory_space<vmem>>, vector<2x64xf32>,
    %c8 = arith.constant 8 : index
    %c0_64 = arith.constant 0 : index
    %63 = vector.load %arg8[%c8, %c0_64] : memref<18x64xf32, #tpu.memory_space<vmem>>, vector<2x64xf32>
    %c0_65 = arith.constant 0 : index
    %c256 = arith.constant 256 : index
    %64 = vector.load %arg9[%c0_65, %c256] : memref<2x576xf32, #tpu.memory_space<vmem>>, vector<2x64xf32>
    tpu.vector_store %arg9[%c0_65, %c256], %63 {strides = array<i32>} : memref<2x576xf32, #tpu.memory_space<vmem>>, vector<2x64xf32>,
    %c10 = arith.constant 10 : index
    %c0_66 = arith.constant 0 : index
    %65 = vector.load %arg8[%c10, %c0_66] : memref<18x64xf32, #tpu.memory_space<vmem>>, vector<2x64xf32>
    %c0_67 = arith.constant 0 : index
    %c320 = arith.constant 320 : index
    %66 = vector.load %arg9[%c0_67, %c320] : memref<2x576xf32, #tpu.memory_space<vmem>>, vector<2x64xf32>
    tpu.vector_store %arg9[%c0_67, %c320], %65 {strides = array<i32>} : memref<2x576xf32, #tpu.memory_space<vmem>>, vector<2x64xf32>,
    %c12 = arith.constant 12 : index
    %c0_68 = arith.constant 0 : index
    %67 = vector.load %arg8[%c12, %c0_68] : memref<18x64xf32, #tpu.memory_space<vmem>>, vector<2x64xf32>
    %c0_69 = arith.constant 0 : index
    %c384 = arith.constant 384 : index
    %68 = vector.load %arg9[%c0_69, %c384] : memref<2x576xf32, #tpu.memory_space<vmem>>, vector<2x64xf32>
    tpu.vector_store %arg9[%c0_69, %c384], %67 {strides = array<i32>} : memref<2x576xf32, #tpu.memory_space<vmem>>, vector<2x64xf32>,
    %c14 = arith.constant 14 : index
    %c0_70 = arith.constant 0 : index
    %69 = vector.load %arg8[%c14, %c0_70] : memref<18x64xf32, #tpu.memory_space<vmem>>, vector<2x64xf32>
    %c0_71 = arith.constant 0 : index
    %c448 = arith.constant 448 : index
    %70 = vector.load %arg9[%c0_71, %c448] : memref<2x576xf32, #tpu.memory_space<vmem>>, vector<2x64xf32>
    tpu.vector_store %arg9[%c0_71, %c448], %69 {strides = array<i32>} : memref<2x576xf32, #tpu.memory_space<vmem>>, vector<2x64xf32>,
    %c16 = arith.constant 16 : index
    %c0_72 = arith.constant 0 : index
    %71 = vector.load %arg8[%c16, %c0_72] : memref<18x64xf32, #tpu.memory_space<vmem>>, vector<2x64xf32>
    %c0_73 = arith.constant 0 : index
    %c512 = arith.constant 512 : index
    %72 = vector.load %arg9[%c0_73, %c512] : memref<2x576xf32, #tpu.memory_space<vmem>>, vector<2x64xf32>
    tpu.vector_store %arg9[%c0_73, %c512], %71 {strides = array<i32>} : memref<2x576xf32, #tpu.memory_space<vmem>>, vector<2x64xf32>,
    %c228 = arith.constant 228 : index
    %c0_74 = arith.constant 0 : index
    %73 = vector.load %arg5[%c228, %c0_74] : memref<232x128xbf16, #tpu.memory_space<vmem>>, vector<1x64xbf16>
    %74 = arith.extf %73 : vector<1x64xbf16> to vector<1x64xf32>
    %c0_75 = arith.constant 0 : index
    %c0_76 = arith.constant 0 : index
    %75 = vector.load %arg9[%c0_75, %c0_76] : memref<2x576xf32, #tpu.memory_space<vmem>>, vector<2x576xf32>
    %76 = arith.truncf %75 : vector<2x576xf32> to vector<2x576xbf16>
    %c0_77 = arith.constant 0 : index
    %c0_78 = arith.constant 0 : index
    %77 = vector.load %arg4[%c0_77, %c0_78] : memref<576x64xbf16, #tpu.memory_space<vmem>>, vector<576x64xbf16>
    %cst_79 = arith.constant dense<0.000000e+00> : vector<2x64xf32>
    %78 = tpu.matmul %76, %77, %cst_79 {dimension_numbers = #tpu.dot_dimension_numbers<[1], [0], [0], [1], [0, 0, 1, 1], [], []>} : vector<2x576xbf16>, vector<576x64xbf16>, vector<2x64xf32> -> vector<2x64xf32>
    %79 = vector.broadcast %74 : vector<1x64xf32> to vector<2x64xf32>
    %80 = arith.addf %78, %79 : vector<2x64xf32>
    %cst_80 = arith.constant 0.000000e+00 : f32
    %81 = vector.broadcast %cst_80 : f32 to vector<2x64xf32>
    %82 = arith.maximumf %80, %81 : vector<2x64xf32>
    %c0_81 = arith.constant 0 : index
    %c0_82 = arith.constant 0 : index
    %83 = vector.load %arg1[%c0_81, %c0_82] : memref<2x32xf32, #tpu.memory_space<vmem>>, vector<2x32xf32>
    %c224 = arith.constant 224 : index
    %c0_83 = arith.constant 0 : index
    %84 = vector.load %arg5[%c224, %c0_83] : memref<232x128xbf16, #tpu.memory_space<vmem>>, vector<1x128xbf16>
    %85 = arith.extf %84 : vector<1x128xbf16> to vector<1x128xf32>
    %86 = arith.truncf %82 : vector<2x64xf32> to vector<2x64xbf16>
    %c0_84 = arith.constant 0 : index
    %c0_85 = arith.constant 0 : index
    %87 = vector.load %arg5[%c0_84, %c0_85] : memref<232x128xbf16, #tpu.memory_space<vmem>>, vector<64x128xbf16>
    %cst_86 = arith.constant dense<0.000000e+00> : vector<2x128xf32>
    %88 = tpu.matmul %86, %87, %cst_86 {dimension_numbers = #tpu.dot_dimension_numbers<[1], [0], [0], [1], [0, 0, 1, 1], [], []>} : vector<2x64xbf16>, vector<64x128xbf16>, vector<2x128xf32> -> vector<2x128xf32>
    %89 = arith.truncf %83 : vector<2x32xf32> to vector<2x32xbf16>
    %c64_87 = arith.constant 64 : index
    %c0_88 = arith.constant 0 : index
    %90 = vector.load %arg5[%c64_87, %c0_88] : memref<232x128xbf16, #tpu.memory_space<vmem>>, vector<32x128xbf16>
    %cst_89 = arith.constant dense<0.000000e+00> : vector<2x128xf32>
    %91 = tpu.matmul %89, %90, %cst_89 {dimension_numbers = #tpu.dot_dimension_numbers<[1], [0], [0], [1], [0, 0, 1, 1], [], []>} : vector<2x32xbf16>, vector<32x128xbf16>, vector<2x128xf32> -> vector<2x128xf32>
    %92 = arith.addf %88, %91 : vector<2x128xf32>
    %93 = vector.broadcast %85 : vector<1x128xf32> to vector<2x128xf32>
    %94 = arith.addf %92, %93 : vector<2x128xf32>
    %95 = vector.extract_strided_slice %94 {offsets = [0, 0], sizes = [2, 32], strides = [1, 1]} : vector<2x128xf32> to vector<2x32xf32>
    %96 = arith.negf %95 : vector<2x32xf32>
    %97 = math.exp %96 : vector<2x32xf32>
    %cst_90 = arith.constant 1.000000e+00 : f32
    %98 = vector.broadcast %cst_90 : f32 to vector<2x32xf32>
    %99 = arith.addf %98, %97 : vector<2x32xf32>
    %100 = arith.divf %98, %99 : vector<2x32xf32>
    %101 = vector.extract_strided_slice %94 {offsets = [0, 32], sizes = [2, 32], strides = [1, 1]} : vector<2x128xf32> to vector<2x32xf32>
    %102 = arith.negf %101 : vector<2x32xf32>
    %103 = math.exp %102 : vector<2x32xf32>
    %cst_91 = arith.constant 1.000000e+00 : f32
    %104 = vector.broadcast %cst_91 : f32 to vector<2x32xf32>
    %105 = arith.addf %104, %103 : vector<2x32xf32>
    %106 = arith.divf %104, %105 : vector<2x32xf32>
    %107 = vector.extract_strided_slice %94 {offsets = [0, 64], sizes = [2, 32], strides = [1, 1]} : vector<2x128xf32> to vector<2x32xf32>
    %108 = vector.extract_strided_slice %94 {offsets = [0, 96], sizes = [2, 32], strides = [1, 1]} : vector<2x128xf32> to vector<2x32xf32>
    %109 = arith.mulf %100, %108 : vector<2x32xf32>
    %110 = arith.addf %107, %109 : vector<2x32xf32>
    %111 = math.tanh %110 : vector<2x32xf32>
    %cst_92 = arith.constant 1.000000e+00 : f32
    %112 = vector.broadcast %cst_92 : f32 to vector<2x32xf32>
    %113 = arith.subf %112, %106 : vector<2x32xf32>
    %114 = arith.mulf %113, %111 : vector<2x32xf32>
    %115 = arith.mulf %106, %83 : vector<2x32xf32>
    %116 = arith.addf %114, %115 : vector<2x32xf32>
    %c226 = arith.constant 226 : index
    %c0_93 = arith.constant 0 : index
    %117 = vector.load %arg5[%c226, %c0_93] : memref<232x128xbf16, #tpu.memory_space<vmem>>, vector<1x32xbf16>
    %118 = arith.extf %117 : vector<1x32xbf16> to vector<1x32xf32>
    %c226_94 = arith.constant 226 : index
    %c64_95 = arith.constant 64 : index
    %119 = vector.load %arg5[%c226_94, %c64_95] : memref<232x128xbf16, #tpu.memory_space<vmem>>, vector<1x64xbf16>
    %120 = arith.extf %119 : vector<1x64xbf16> to vector<1x64xf32>
    %c225 = arith.constant 225 : index
    %c0_96 = arith.constant 0 : index
    %121 = vector.load %arg5[%c225, %c0_96] : memref<232x128xbf16, #tpu.memory_space<vmem>>, vector<1x128xbf16>
    %122 = arith.extf %121 : vector<1x128xbf16> to vector<1x128xf32>
    %123 = arith.truncf %116 : vector<2x32xf32> to vector<2x32xbf16>
    %c160 = arith.constant 160 : index
    %c0_97 = arith.constant 0 : index
    %124 = vector.load %arg5[%c160, %c0_97] : memref<232x128xbf16, #tpu.memory_space<vmem>>, vector<32x32xbf16>
    %cst_98 = arith.constant dense<0.000000e+00> : vector<2x32xf32>
    %125 = tpu.matmul %123, %124, %cst_98 {dimension_numbers = #tpu.dot_dimension_numbers<[1], [0], [0], [1], [0, 0, 1, 1], [], []>} : vector<2x32xbf16>, vector<32x32xbf16>, vector<2x32xf32> -> vector<2x32xf32>
    %126 = vector.broadcast %118 : vector<1x32xf32> to vector<2x32xf32>
    %127 = arith.addf %125, %126 : vector<2x32xf32>
    %cst_99 = arith.constant 0.000000e+00 : f32
    %128 = vector.broadcast %cst_99 : f32 to vector<2x32xf32>
    %129 = arith.maximumf %127, %128 : vector<2x32xf32>
    %130 = arith.truncf %129 : vector<2x32xf32> to vector<2x32xbf16>
    %c192_100 = arith.constant 192 : index
    %c0_101 = arith.constant 0 : index
    %131 = vector.load %arg5[%c192_100, %c0_101] : memref<232x128xbf16, #tpu.memory_space<vmem>>, vector<32x64xbf16>
    %cst_102 = arith.constant dense<0.000000e+00> : vector<2x64xf32>
    %132 = tpu.matmul %130, %131, %cst_102 {dimension_numbers = #tpu.dot_dimension_numbers<[1], [0], [0], [1], [0, 0, 1, 1], [], []>} : vector<2x32xbf16>, vector<32x64xbf16>, vector<2x64xf32> -> vector<2x64xf32>
    %133 = vector.broadcast %120 : vector<1x64xf32> to vector<2x64xf32>
    %134 = arith.addf %132, %133 : vector<2x64xf32>
    %cst_103 = arith.constant 0.000000e+00 : f32
    %135 = vector.broadcast %cst_103 : f32 to vector<2x64xf32>
    %136 = arith.maximumf %134, %135 : vector<2x64xf32>
    %137 = arith.truncf %136 : vector<2x64xf32> to vector<2x64xbf16>
    %c96_104 = arith.constant 96 : index
    %c0_105 = arith.constant 0 : index
    %138 = vector.load %arg5[%c96_104, %c0_105] : memref<232x128xbf16, #tpu.memory_space<vmem>>, vector<64x128xbf16>
    %cst_106 = arith.constant dense<0.000000e+00> : vector<2x128xf32>
    %139 = tpu.matmul %137, %138, %cst_106 {dimension_numbers = #tpu.dot_dimension_numbers<[1], [0], [0], [1], [0, 0, 1, 1], [], []>} : vector<2x64xbf16>, vector<64x128xbf16>, vector<2x128xf32> -> vector<2x128xf32>
    %140 = vector.broadcast %122 : vector<1x128xf32> to vector<2x128xf32>
    %141 = arith.addf %139, %140 : vector<2x128xf32>
    %c0_107 = arith.constant 0 : index
    %c0_108 = arith.constant 0 : index
    %142 = vector.load %arg6[%c0_107, %c0_108] : memref<2x128xf32, #tpu.memory_space<vmem>>, vector<2x128xf32>
    tpu.vector_store %arg6[%c0_107, %c0_108], %141 {strides = array<i32>} : memref<2x128xf32, #tpu.memory_space<vmem>>, vector<2x128xf32>,
    %c0_109 = arith.constant 0 : index
    %c64_110 = arith.constant 64 : index
    %143 = vector.load %arg6[%c0_109, %c64_110] : memref<2x128xf32, #tpu.memory_space<vmem>>, vector<2x32xf32>
    tpu.vector_store %arg6[%c0_109, %c64_110], %116 {strides = array<i32>} : memref<2x128xf32, #tpu.memory_space<vmem>>, vector<2x32xf32>,
    return
  }
}

</mosaic_0001>

<llo_original>
// kernel: forward.1
$region0: #{forward.1}
  #allocation0 [shape = 'u32[]', space=smem, size = 0x4, offset = 0x4, fixed_abs, tag = 'smem constant byte address 0x4 - core index']
  #allocation1 [shape = 'u32[144,128]{1,0:T(1,128)}', space=vmem, size = 0x12000, scoped, tag = 'internal scratch']
  #allocation2 [shape = 'f32[4,4,2,128]{3,2,1,0:T(2,128)}', space=vmem, size = 0x4000, scoped, tag = 'scratch operand']
  #allocation3 [shape = 'f32[18,64]{1,0:T(8,128)}', space=vmem, size = 0x3000, scoped, tag = 'scratch operand']
  #allocation4 [shape = 'f32[2,576]{1,0:T(2,128)}', space=vmem, size = 0x1400, scoped, tag = 'scratch operand']
  %s0 = inlined_call_operand.vmem [shape: bf16[128,256], index: 0, kind: input, shape index: {}]
  %s1 = inlined_call_operand.vmem [shape: f32[2,32], index: 1, kind: input, shape index: {}]
  %s2 = inlined_call_operand.vmem [shape: bf16[256,32], index: 2, kind: input, shape index: {}]
  %s3 = inlined_call_operand.vmem [shape: bf16[4,128,64], index: 3, kind: input, shape index: {}]
  %s4 = inlined_call_operand.vmem [shape: bf16[576,64], index: 4, kind: input, shape index: {}]
  %s5 = inlined_call_operand.vmem [shape: bf16[232,128], index: 5, kind: input, shape index: {}]
  %s6 = inlined_call_operand.vmem [shape: f32[2,128], index: 6, kind: output, shape index: {}]
  %s7 = sld [smem:[#allocation0]]
  $region34: #{forward.1} parent=0
    _
  %s9 = ssub.s32 1, %s7
  %s10 = scalar_select 0, %s9, %s7
  // Predicated region
  $region2: #{forward.1} parent=0 // pred_check
    _
  $region3: #{forward.1} parent=0 // pred_check_branch
    %12 = sbr.rel (0) target = $region5
  $region4: #{forward.1} parent=0 // pred_region
    _
  $region5: #{forward.1} parent=0 // pred_fallthru
    _
  // Predicated region
  $region6: #{forward.1} parent=0 // pred_check
    _
  $region7: #{forward.1} parent=0 // pred_check_branch
    %14 = sbr.rel (0) target = $region9
  $region8: #{forward.1} parent=0 // pred_region
    _
  $region9: #{forward.1} parent=0 // pred_fallthru
    _
  // Predicated region
  $region10: #{forward.1} parent=0 // pred_check
    _
  $region11: #{forward.1} parent=0 // pred_check_branch
    %16 = sbr.rel (0) target = $region13
  $region12: #{forward.1} parent=0 // pred_region
    _
  $region13: #{forward.1} parent=0 // pred_fallthru
    _
  // Predicated region
  $region14: #{forward.1} parent=0 // pred_check
    _
  $region15: #{forward.1} parent=0 // pred_check_branch
    %18 = sbr.rel (0) target = $region17
  $region16: #{forward.1} parent=0 // pred_region
    _
  $region17: #{forward.1} parent=0 // pred_fallthru
    _
  // Predicated region
  $region18: #{forward.1} parent=0 // pred_check
    _
  $region19: #{forward.1} parent=0 // pred_check_branch
    %20 = sbr.rel (0) target = $region21
  $region20: #{forward.1} parent=0 // pred_region
    _
  $region21: #{forward.1} parent=0 // pred_fallthru
    _
  // Predicated region
  $region22: #{forward.1} parent=0 // pred_check
    _
  $region23: #{forward.1} parent=0 // pred_check_branch
    %22 = sbr.rel (0) target = $region25
  $region24: #{forward.1} parent=0 // pred_region
    _
  $region25: #{forward.1} parent=0 // pred_fallthru
    _
  %v24 = vld [vmem:[%s5 + $0x70] sm:$0x2]
  %v25 = vunpack.c.l.bf16 %v24
  %v26 = vld [vmem:[%s0] sm:$0xff]
  %v27 = vld [vmem:[%s0 + $0x8] sm:$0xff]
  %v28 = vld [vmem:[%s0 + $0x10] sm:$0xff]
  %v29 = vld [vmem:[%s0 + $0x18] sm:$0xff]
  %v30 = vld [vmem:[%s0 + $0x20] sm:$0xff]
  %v31 = vld [vmem:[%s0 + $0x28] sm:$0xff]
  %v32 = vld [vmem:[%s0 + $0x30] sm:$0xff]
  %v33 = vld [vmem:[%s0 + $0x38] sm:$0xff]
  %v34 = vld [vmem:[%s0 + $0x40] sm:$0xff]
  %v35 = vld [vmem:[%s0 + $0x48] sm:$0xff]
  %v36 = vld [vmem:[%s0 + $0x50] sm:$0xff]
  %v37 = vld [vmem:[%s0 + $0x58] sm:$0xff]
  %v38 = vld [vmem:[%s0 + $0x60] sm:$0xff]
  %v39 = vld [vmem:[%s0 + $0x68] sm:$0xff]
  %v40 = vld [vmem:[%s0 + $0x70] sm:$0xff]
  %v41 = vld [vmem:[%s0 + $0x78] sm:$0xff]
  %v42 = vld [vmem:[%s2] sm:$0xf]
  %v43 = vld [vmem:[%s2 + $0x4] sm:$0xf]
  %v44 = vld [vmem:[%s2 + $0x8] sm:$0xf]
  %v45 = vld [vmem:[%s2 + $0xc] sm:$0xf]
  %v46 = vld [vmem:[%s2 + $0x10] sm:$0xf]
  %v47 = vld [vmem:[%s2 + $0x14] sm:$0xf]
  %v48 = vld [vmem:[%s2 + $0x18] sm:$0xf]
  %v49 = vld [vmem:[%s2 + $0x1c] sm:$0xf]
  %v50 = vld [vmem:[%s2 + $0x20] sm:$0xf]
  %v51 = vld [vmem:[%s2 + $0x24] sm:$0xf]
  %v52 = vld [vmem:[%s2 + $0x28] sm:$0xf]
  %v53 = vld [vmem:[%s2 + $0x2c] sm:$0xf]
  %v54 = vld [vmem:[%s2 + $0x30] sm:$0xf]
  %v55 = vld [vmem:[%s2 + $0x34] sm:$0xf]
  %v56 = vld [vmem:[%s2 + $0x38] sm:$0xf]
  %v57 = vld [vmem:[%s2 + $0x3c] sm:$0xf]
  %v58 = vld [vmem:[%s2 + $0x40] sm:$0xf]
  %v59 = vld [vmem:[%s2 + $0x44] sm:$0xf]
  %v60 = vld [vmem:[%s2 + $0x48] sm:$0xf]
  %v61 = vld [vmem:[%s2 + $0x4c] sm:$0xf]
  %v62 = vld [vmem:[%s2 + $0x50] sm:$0xf]
  %v63 = vld [vmem:[%s2 + $0x54] sm:$0xf]
  %v64 = vld [vmem:[%s2 + $0x58] sm:$0xf]
  %v65 = vld [vmem:[%s2 + $0x5c] sm:$0xf]
  %v66 = vld [vmem:[%s2 + $0x60] sm:$0xf]
  %v67 = vld [vmem:[%s2 + $0x64] sm:$0xf]
  %v68 = vld [vmem:[%s2 + $0x68] sm:$0xf]
  %v69 = vld [vmem:[%s2 + $0x6c] sm:$0xf]
  %v70 = vld [vmem:[%s2 + $0x70] sm:$0xf]
  %v71 = vld [vmem:[%s2 + $0x74] sm:$0xf]
  %v72 = vld [vmem:[%s2 + $0x78] sm:$0xf]
  %v73 = vld [vmem:[%s2 + $0x7c] sm:$0xf]
  %v74 = vlaneseq
  %v75 = vshrl.u32 %v74, 7
  %v76 = vsub.s32 3, %v75
  %v77 = vrot.slane %v25, %v76
  %v94 = vunpack.c.l.b16 %v26
  %v95 = vunpack.c.h.b16 %v26
  %v96 = vunpack.c.l.b16 %v27
  %v97 = vunpack.c.h.b16 %v27
  %v98 = vunpack.c.l.b16 %v28
  %v99 = vunpack.c.h.b16 %v28
  %v100 = vunpack.c.l.b16 %v29
  %v101 = vunpack.c.h.b16 %v29
  %v102 = vunpack.c.l.b16 %v30
  %v103 = vunpack.c.h.b16 %v30
  %v104 = vunpack.c.l.b16 %v31
  %v105 = vunpack.c.h.b16 %v31
  %v106 = vunpack.c.l.b16 %v32
  %v107 = vunpack.c.h.b16 %v32
  %v108 = vunpack.c.l.b16 %v33
  %v109 = vunpack.c.h.b16 %v33
  %v110 = vunpack.c.l.b16 %v34
  %v111 = vunpack.c.h.b16 %v34
  %v112 = vunpack.c.l.b16 %v35
  %v113 = vunpack.c.h.b16 %v35
  %v114 = vunpack.c.l.b16 %v36
  %v115 = vunpack.c.h.b16 %v36
  %v116 = vunpack.c.l.b16 %v37
  %v117 = vunpack.c.h.b16 %v37
  %v118 = vunpack.c.l.b16 %v38
  %v119 = vunpack.c.h.b16 %v38
  %v120 = vunpack.c.l.b16 %v39
  %v121 = vunpack.c.h.b16 %v39
  %v122 = vunpack.c.l.b16 %v40
  %v123 = vunpack.c.h.b16 %v40
  %v124 = vunpack.c.l.b16 %v41
  %v125 = vunpack.c.h.b16 %v41
  %v126 = vpack.c.b16 %v96, %v94
  %v127 = vpack.c.b16 %v97, %v95
  %v128 = vpack.c.b16 %v100, %v98
  %v129 = vpack.c.b16 %v101, %v99
  %v130 = vpack.c.b16 %v104, %v102
  %v131 = vpack.c.b16 %v105, %v103
  %v132 = vpack.c.b16 %v108, %v106
  %v133 = vpack.c.b16 %v109, %v107
  %v134 = vpack.c.b16 %v112, %v110
  %v135 = vpack.c.b16 %v113, %v111
  %v136 = vpack.c.b16 %v116, %v114
  %v137 = vpack.c.b16 %v117, %v115
  %v138 = vpack.c.b16 %v120, %v118
  %v139 = vpack.c.b16 %v121, %v119
  %v140 = vpack.c.b16 %v124, %v122
  %v141 = vpack.c.b16 %v125, %v123
  %v190 = vunpack.c.l.b16 %v42
  %v191 = vunpack.c.l.b16 %v43
  %v192 = vunpack.c.l.b16 %v44
  %v193 = vunpack.c.l.b16 %v45
  %v194 = vunpack.c.l.b16 %v46
  %v195 = vunpack.c.l.b16 %v47
  %v196 = vunpack.c.l.b16 %v48
  %v197 = vunpack.c.l.b16 %v49
  %v198 = vunpack.c.l.b16 %v50
  %v199 = vunpack.c.l.b16 %v51
  %v200 = vunpack.c.l.b16 %v52
  %v201 = vunpack.c.l.b16 %v53
  %v202 = vunpack.c.l.b16 %v54
  %v203 = vunpack.c.l.b16 %v55
  %v204 = vunpack.c.l.b16 %v56
  %v205 = vunpack.c.l.b16 %v57
  %v206 = vunpack.c.l.b16 %v58
  %v207 = vunpack.c.l.b16 %v59
  %v208 = vunpack.c.l.b16 %v60
  %v209 = vunpack.c.l.b16 %v61
  %v210 = vunpack.c.l.b16 %v62
  %v211 = vunpack.c.l.b16 %v63
  %v212 = vunpack.c.l.b16 %v64
  %v213 = vunpack.c.l.b16 %v65
  %v214 = vunpack.c.l.b16 %v66
  %v215 = vunpack.c.l.b16 %v67
  %v216 = vunpack.c.l.b16 %v68
  %v217 = vunpack.c.l.b16 %v69
  %v218 = vunpack.c.l.b16 %v70
  %v219 = vunpack.c.l.b16 %v71
  %v220 = vunpack.c.l.b16 %v72
  %v221 = vunpack.c.l.b16 %v73
  %v222 = vpack.c.b16 %v191, %v190
  %v223 = vpack.c.b16 %v193, %v192
  %v224 = vpack.c.b16 %v195, %v194
  %v225 = vpack.c.b16 %v197, %v196
  %v226 = vpack.c.b16 %v199, %v198
  %v227 = vpack.c.b16 %v201, %v200
  %v228 = vpack.c.b16 %v203, %v202
  %v229 = vpack.c.b16 %v205, %v204
  %v230 = vpack.c.b16 %v207, %v206
  %v231 = vpack.c.b16 %v209, %v208
  %v232 = vpack.c.b16 %v211, %v210
  %v233 = vpack.c.b16 %v213, %v212
  %v234 = vpack.c.b16 %v215, %v214
  %v235 = vpack.c.b16 %v217, %v216
  %v236 = vpack.c.b16 %v219, %v218
  %v237 = vpack.c.b16 %v221, %v220
  %254 = vmatprep.subr.bf16.mxu0 0
  %255 = vmatpush1.bf16.msra.mxu0 %v229
  %256 = vmatprep.subr.bf16.mxu0 0
  %257 = vmatpush1.bf16.msra.mxu0 %v228
  %258 = vmatprep.subr.bf16.mxu0 0
  %259 = vmatpush1.bf16.msra.mxu0 %v227
  %260 = vmatprep.subr.bf16.mxu0 0
  %261 = vmatpush1.bf16.msra.mxu0 %v226
  %262 = vmatprep.subr.bf16.mxu0 0
  %263 = vmatpush1.bf16.msra.mxu0 %v225
  %264 = vmatprep.subr.bf16.mxu0 0
  %265 = vmatpush1.bf16.msra.mxu0 %v224
  %266 = vmatprep.subr.bf16.mxu0 0
  %267 = vmatpush1.bf16.msra.mxu0 %v223
  %268 = vmatprep.subr.bf16.mxu0 0
  %269 = vmatpush1.bf16.msra.mxu0 %v222
  %270 = vmatprep.subr.bf16.mxu0 0
  %271 = vmatpush2.bf16.msra.mxu0 %v237
  %272 = vmatprep.subr.bf16.mxu0 0
  %273 = vmatpush2.bf16.msra.mxu0 %v236
  %274 = vmatprep.subr.bf16.mxu0 0
  %275 = vmatpush2.bf16.msra.mxu0 %v235
  %276 = vmatprep.subr.bf16.mxu0 0
  %277 = vmatpush2.bf16.msra.mxu0 %v234
  %278 = vmatprep.subr.bf16.mxu0 0
  %279 = vmatpush2.bf16.msra.mxu0 %v233
  %280 = vmatprep.subr.bf16.mxu0 0
  %281 = vmatpush2.bf16.msra.mxu0 %v232
  %282 = vmatprep.subr.bf16.mxu0 0
  %283 = vmatpush2.bf16.msra.mxu0 %v231
  %284 = vmatprep.subr.bf16.mxu0 0
  %285 = vmatpush2.bf16.msra.mxu0 %v230
  %286 = vmatprep.mubr.bf16.mxu0 %v127
  %287 = vmatmul.mubr.bf16.gmra.mxu0 %v126
  %v288 = vpop.f32.mrf.mxu0
  %v289 = vadd.f32 %v77, %v288
  %v290 = vpop.f32.mrf.mxu0
  %v291 = vpop.f32.mrf.mxu0
  %v292 = vadd.f32 %v77, %v291
  %v293 = vpop.f32.mrf.mxu0
  %294 = vmatprep.mubr.bf16.mxu0 %v129
  %295 = vmatmul.mubr.bf16.gmra.mxu0 %v128
  %v296 = vpop.f32.mrf.mxu0
  %v297 = vadd.f32 %v77, %v296
  %v298 = vpop.f32.mrf.mxu0
  %v299 = vpop.f32.mrf.mxu0
  %v300 = vadd.f32 %v77, %v299
  %v301 = vpop.f32.mrf.mxu0
  %302 = vmatprep.mubr.bf16.mxu0 %v131
  %303 = vmatmul.mubr.bf16.gmra.mxu0 %v130
  %v304 = vpop.f32.mrf.mxu0
  %v305 = vadd.f32 %v77, %v304
  %v306 = vpop.f32.mrf.mxu0
  %v307 = vpop.f32.mrf.mxu0
  %v308 = vadd.f32 %v77, %v307
  %v309 = vpop.f32.mrf.mxu0
  %310 = vmatprep.mubr.bf16.mxu0 %v133
  %311 = vmatmul.mubr.bf16.gmra.mxu0 %v132
  %v312 = vpop.f32.mrf.mxu0
  %v313 = vadd.f32 %v77, %v312
  %v314 = vpop.f32.mrf.mxu0
  %v315 = vpop.f32.mrf.mxu0
  %v316 = vadd.f32 %v77, %v315
  %v317 = vpop.f32.mrf.mxu0
  %318 = vmatprep.mubr.bf16.mxu0 %v135
  %319 = vmatmul.mubr.bf16.gmra.mxu0 %v134
  %v320 = vpop.f32.mrf.mxu0
  %v321 = vadd.f32 %v77, %v320
  %v322 = vpop.f32.mrf.mxu0
  %v323 = vpop.f32.mrf.mxu0
  %v324 = vadd.f32 %v77, %v323
  %v325 = vpop.f32.mrf.mxu0
  %326 = vmatprep.mubr.bf16.mxu0 %v137
  %327 = vmatmul.mubr.bf16.gmra.mxu0 %v136
  %v328 = vpop.f32.mrf.mxu0
  %v329 = vadd.f32 %v77, %v328
  %v330 = vpop.f32.mrf.mxu0
  %v331 = vpop.f32.mrf.mxu0
  %v332 = vadd.f32 %v77, %v331
  %v333 = vpop.f32.mrf.mxu0
  %334 = vmatprep.mubr.bf16.mxu0 %v139
  %335 = vmatmul.mubr.bf16.gmra.mxu0 %v138
  %v336 = vpop.f32.mrf.mxu0
  %v337 = vadd.f32 %v77, %v336
  %v338 = vpop.f32.mrf.mxu0
  %v339 = vpop.f32.mrf.mxu0
  %v340 = vadd.f32 %v77, %v339
  %v341 = vpop.f32.mrf.mxu0
  %342 = vmatprep.mubr.bf16.mxu0 %v141
  %343 = vmatmul.mubr.bf16.gmra.mxu0 %v140
  %v344 = vpop.f32.mrf.mxu0
  %v345 = vadd.f32 %v77, %v344
  %v346 = vpop.f32.mrf.mxu0
  %v347 = vpop.f32.mrf.mxu0
  %v348 = vadd.f32 %v77, %v347
  %v349 = vpop.f32.mrf.mxu0
  %350 = vdwg.mxu0
  %v351 = vmax.f32 %v289, 0.0
  %v352 = vmax.f32 %v292, 0.0
  %v353 = vmax.f32 %v297, 0.0
  %v354 = vmax.f32 %v300, 0.0
  %v355 = vmax.f32 %v305, 0.0
  %v356 = vmax.f32 %v308, 0.0
  %v357 = vmax.f32 %v313, 0.0
  %v358 = vmax.f32 %v316, 0.0
  %v359 = vmax.f32 %v321, 0.0
  %v360 = vmax.f32 %v324, 0.0
  %v361 = vmax.f32 %v329, 0.0
  %v362 = vmax.f32 %v332, 0.0
  %v363 = vmax.f32 %v337, 0.0
  %v364 = vmax.f32 %v340, 0.0
  %v365 = vmax.f32 %v345, 0.0
  %v366 = vmax.f32 %v348, 0.0
  %v371 = vcombine.high %v351, %v351
  %v373 = vunpack.c.l.s4 1983009808
  %v374 = vunpack.c.0.s8 %v373
  %v375 = vlaneseq
  %v376 = vshrl.u32 %v375, 7
  %v377 = vsub.s32 %v374, %v376
  %v378 = vrot.slane %v351, %v377
  %v380 = vunpack.c.l.s4 1983009808
  %v381 = vunpack.c.0.s8 %v380
  %v382 = vlaneseq
  %v383 = vshrl.u32 %v382, 7
  %v384 = vsub.s32 %v381, %v383
  %v385 = vrot.slane %v371, %v384
  %v386 = vcombine.high %v378, %v378
  %v387 = vcombine.high %v385, %v385
  %v388 = vcombine.high %v352, %v352
  %v390 = vunpack.c.l.s4 1983009808
  %v391 = vunpack.c.0.s8 %v390
  %v392 = vlaneseq
  %v393 = vshrl.u32 %v392, 7
  %v394 = vsub.s32 %v391, %v393
  %v395 = vrot.slane %v352, %v394
  %v397 = vunpack.c.l.s4 1983009808
  %v398 = vunpack.c.0.s8 %v397
  %v399 = vlaneseq
  %v400 = vshrl.u32 %v399, 7
  %v401 = vsub.s32 %v398, %v400
  %v402 = vrot.slane %v388, %v401
  %v403 = vcombine.high %v395, %v395
  %v404 = vcombine.high %v402, %v402
  %v405 = vcombine.high %v353, %v353
  %v407 = vunpack.c.l.s4 1983009808
  %v408 = vunpack.c.0.s8 %v407
  %v409 = vlaneseq
  %v410 = vshrl.u32 %v409, 7
  %v411 = vsub.s32 %v408, %v410
  %v412 = vrot.slane %v353, %v411
  %v414 = vunpack.c.l.s4 1983009808
  %v415 = vunpack.c.0.s8 %v414
  %v416 = vlaneseq
  %v417 = vshrl.u32 %v416, 7
  %v418 = vsub.s32 %v415, %v417
  %v419 = vrot.slane %v405, %v418
  %v420 = vcombine.high %v412, %v412
  %v421 = vcombine.high %v419, %v419
  %v422 = vcombine.high %v354, %v354
  %v424 = vunpack.c.l.s4 1983009808
  %v425 = vunpack.c.0.s8 %v424
  %v426 = vlaneseq
  %v427 = vshrl.u32 %v426, 7
  %v428 = vsub.s32 %v425, %v427
  %v429 = vrot.slane %v354, %v428
  %v431 = vunpack.c.l.s4 1983009808
  %v432 = vunpack.c.0.s8 %v431
  %v433 = vlaneseq
  %v434 = vshrl.u32 %v433, 7
  %v435 = vsub.s32 %v432, %v434
  %v436 = vrot.slane %v422, %v435
  %v437 = vcombine.high %v429, %v429
  %v438 = vcombine.high %v436, %v436
  %vm455 = vcmask 254976
  %456 = vst.msk [vmem:[#allocation2] sm:$0x3] %vm455, %v378
  %457 = vst.msk [vmem:[#allocation2 + $0x2] sm:$0x3] %vm455, %v386
  %458 = vst.msk [vmem:[#allocation2 + $0x4] sm:$0x3] %vm455, %v385
  %459 = vst.msk [vmem:[#allocation2 + $0x6] sm:$0x3] %vm455, %v387
  %460 = vst.msk [vmem:[#allocation2 + $0x8] sm:$0x3] %vm455, %v395
  %461 = vst.msk [vmem:[#allocation2 + $0xa] sm:$0x3] %vm455, %v403
  %462 = vst.msk [vmem:[#allocation2 + $0xc] sm:$0x3] %vm455, %v402
  %463 = vst.msk [vmem:[#allocation2 + $0xe] sm:$0x3] %vm455, %v404
  %464 = vst.msk [vmem:[#allocation2 + $0x10] sm:$0x3] %vm455, %v412
  %465 = vst.msk [vmem:[#allocation2 + $0x12] sm:$0x3] %vm455, %v420
  %466 = vst.msk [vmem:[#allocation2 + $0x14] sm:$0x3] %vm455, %v419
  %467 = vst.msk [vmem:[#allocation2 + $0x16] sm:$0x3] %vm455, %v421
  %468 = vst.msk [vmem:[#allocation2 + $0x18] sm:$0x3] %vm455, %v429
  %469 = vst.msk [vmem:[#allocation2 + $0x1a] sm:$0x3] %vm455, %v437
  %470 = vst.msk [vmem:[#allocation2 + $0x1c] sm:$0x3] %vm455, %v436
  %471 = vst.msk [vmem:[#allocation2 + $0x1e] sm:$0x3] %vm455, %v438
  %v476 = vcombine.high %v355, %v355
  %v478 = vunpack.c.l.s4 1983009808
  %v479 = vunpack.c.0.s8 %v478
  %v480 = vlaneseq
  %v481 = vshrl.u32 %v480, 7
  %v482 = vsub.s32 %v479, %v481
  %v483 = vrot.slane %v355, %v482
  %v485 = vunpack.c.l.s4 1983009808
  %v486 = vunpack.c.0.s8 %v485
  %v487 = vlaneseq
  %v488 = vshrl.u32 %v487, 7
  %v489 = vsub.s32 %v486, %v488
  %v490 = vrot.slane %v476, %v489
  %v491 = vcombine.high %v483, %v483
  %v492 = vcombine.high %v490, %v490
  %v493 = vcombine.high %v356, %v356
  %v495 = vunpack.c.l.s4 1983009808
  %v496 = vunpack.c.0.s8 %v495
  %v497 = vlaneseq
  %v498 = vshrl.u32 %v497, 7
  %v499 = vsub.s32 %v496, %v498
  %v500 = vrot.slane %v356, %v499
  %v502 = vunpack.c.l.s4 1983009808
  %v503 = vunpack.c.0.s8 %v502
  %v504 = vlaneseq
  %v505 = vshrl.u32 %v504, 7
  %v506 = vsub.s32 %v503, %v505
  %v507 = vrot.slane %v493, %v506
  %v508 = vcombine.high %v500, %v500
  %v509 = vcombine.high %v507, %v507
  %v510 = vcombine.high %v357, %v357
  %v512 = vunpack.c.l.s4 1983009808
  %v513 = vunpack.c.0.s8 %v512
  %v514 = vlaneseq
  %v515 = vshrl.u32 %v514, 7
  %v516 = vsub.s32 %v513, %v515
  %v517 = vrot.slane %v357, %v516
  %v519 = vunpack.c.l.s4 1983009808
  %v520 = vunpack.c.0.s8 %v519
  %v521 = vlaneseq
  %v522 = vshrl.u32 %v521, 7
  %v523 = vsub.s32 %v520, %v522
  %v524 = vrot.slane %v510, %v523
  %v525 = vcombine.high %v517, %v517
  %v526 = vcombine.high %v524, %v524
  %v527 = vcombine.high %v358, %v358
  %v529 = vunpack.c.l.s4 1983009808
  %v530 = vunpack.c.0.s8 %v529
  %v531 = vlaneseq
  %v532 = vshrl.u32 %v531, 7
  %v533 = vsub.s32 %v530, %v532
  %v534 = vrot.slane %v358, %v533
  %v536 = vunpack.c.l.s4 1983009808
  %v537 = vunpack.c.0.s8 %v536
  %v538 = vlaneseq
  %v539 = vshrl.u32 %v538, 7
  %v540 = vsub.s32 %v537, %v539
  %v541 = vrot.slane %v527, %v540
  %v542 = vcombine.high %v534, %v534
  %v543 = vcombine.high %v541, %v541
  %v545 = vunpack.c.l.s4 1983009808
  %v546 = vunpack.c.0.s8 %v545
  %v547 = vlaneseq
  %v548 = vshrl.u32 %v547, 7
  %v549 = vsub.s32 %v546, %v548
  %v550 = vrot.slane %v483, %v549
  %v552 = vunpack.c.l.s4 1983009808
  %v553 = vunpack.c.0.s8 %v552
  %v554 = vlaneseq
  %v555 = vshrl.u32 %v554, 7
  %v556 = vsub.s32 %v553, %v555
  %v557 = vrot.slane %v491, %v556
  %v559 = vunpack.c.l.s4 1983009808
  %v560 = vunpack.c.0.s8 %v559
  %v561 = vlaneseq
  %v562 = vshrl.u32 %v561, 7
  %v563 = vsub.s32 %v560, %v562
  %v564 = vrot.slane %v490, %v563
  %v566 = vunpack.c.l.s4 1983009808
  %v567 = vunpack.c.0.s8 %v566
  %v568 = vlaneseq
  %v569 = vshrl.u32 %v568, 7
  %v570 = vsub.s32 %v567, %v569
  %v571 = vrot.slane %v492, %v570
  %v573 = vunpack.c.l.s4 1983009808
  %v574 = vunpack.c.0.s8 %v573
  %v575 = vlaneseq
  %v576 = vshrl.u32 %v575, 7
  %v577 = vsub.s32 %v574, %v576
  %v578 = vrot.slane %v500, %v577
  %v580 = vunpack.c.l.s4 1983009808
  %v581 = vunpack.c.0.s8 %v580
  %v582 = vlaneseq
  %v583 = vshrl.u32 %v582, 7
  %v584 = vsub.s32 %v581, %v583
  %v585 = vrot.slane %v508, %v584
  %v587 = vunpack.c.l.s4 1983009808
  %v588 = vunpack.c.0.s8 %v587
  %v589 = vlaneseq
  %v590 = vshrl.u32 %v589, 7
  %v591 = vsub.s32 %v588, %v590
  %v592 = vrot.slane %v507, %v591
  %v594 = vunpack.c.l.s4 1983009808
  %v595 = vunpack.c.0.s8 %v594
  %v596 = vlaneseq
  %v597 = vshrl.u32 %v596, 7
  %v598 = vsub.s32 %v595, %v597
  %v599 = vrot.slane %v509, %v598
  %v601 = vunpack.c.l.s4 1983009808
  %v602 = vunpack.c.0.s8 %v601
  %v603 = vlaneseq
  %v604 = vshrl.u32 %v603, 7
  %v605 = vsub.s32 %v602, %v604
  %v606 = vrot.slane %v517, %v605
  %v608 = vunpack.c.l.s4 1983009808
  %v609 = vunpack.c.0.s8 %v608
  %v610 = vlaneseq
  %v611 = vshrl.u32 %v610, 7
  %v612 = vsub.s32 %v609, %v611
  %v613 = vrot.slane %v525, %v612
  %v615 = vunpack.c.l.s4 1983009808
  %v616 = vunpack.c.0.s8 %v615
  %v617 = vlaneseq
  %v618 = vshrl.u32 %v617, 7
  %v619 = vsub.s32 %v616, %v618
  %v620 = vrot.slane %v524, %v619
  %v622 = vunpack.c.l.s4 1983009808
  %v623 = vunpack.c.0.s8 %v622
  %v624 = vlaneseq
  %v625 = vshrl.u32 %v624, 7
  %v626 = vsub.s32 %v623, %v625
  %v627 = vrot.slane %v526, %v626
  %v629 = vunpack.c.l.s4 1983009808
  %v630 = vunpack.c.0.s8 %v629
  %v631 = vlaneseq
  %v632 = vshrl.u32 %v631, 7
  %v633 = vsub.s32 %v630, %v632
  %v634 = vrot.slane %v534, %v633
  %v636 = vunpack.c.l.s4 1983009808
  %v637 = vunpack.c.0.s8 %v636
  %v638 = vlaneseq
  %v639 = vshrl.u32 %v638, 7
  %v640 = vsub.s32 %v637, %v639
  %v641 = vrot.slane %v542, %v640
  %v643 = vunpack.c.l.s4 1983009808
  %v644 = vunpack.c.0.s8 %v643
  %v645 = vlaneseq
  %v646 = vshrl.u32 %v645, 7
  %v647 = vsub.s32 %v644, %v646
  %v648 = vrot.slane %v541, %v647
  %v650 = vunpack.c.l.s4 1983009808
  %v651 = vunpack.c.0.s8 %v650
  %v652 = vlaneseq
  %v653 = vshrl.u32 %v652, 7
  %v654 = vsub.s32 %v651, %v653
  %v655 = vrot.slane %v543, %v654
  %656 = vrot.lane.b32.xlu0 %v550, 32
  %v657 = vpop.permute.xlu0 %656
  %658 = vrot.lane.b32.xlu0 %v557, 32
  %v659 = vpop.permute.xlu0 %658
  %660 = vrot.lane.b32.xlu0 %v564, 32
  %v661 = vpop.permute.xlu0 %660
  %662 = vrot.lane.b32.xlu0 %v571, 32
  %v663 = vpop.permute.xlu0 %662
  %664 = vrot.lane.b32.xlu0 %v578, 32
  %v665 = vpop.permute.xlu0 %664
  %666 = vrot.lane.b32.xlu0 %v585, 32
  %v667 = vpop.permute.xlu0 %666
  %668 = vrot.lane.b32.xlu0 %v592, 32
  %v669 = vpop.permute.xlu0 %668
  %670 = vrot.lane.b32.xlu0 %v599, 32
  %v671 = vpop.permute.xlu0 %670
  %672 = vrot.lane.b32.xlu0 %v606, 32
  %v673 = vpop.permute.xlu0 %672
  %674 = vrot.lane.b32.xlu0 %v613, 32
  %v675 = vpop.permute.xlu0 %674
  %676 = vrot.lane.b32.xlu0 %v620, 32
  %v677 = vpop.permute.xlu0 %676
  %678 = vrot.lane.b32.xlu0 %v627, 32
  %v679 = vpop.permute.xlu0 %678
  %680 = vrot.lane.b32.xlu0 %v634, 32
  %v681 = vpop.permute.xlu0 %680
  %682 = vrot.lane.b32.xlu0 %v641, 32
  %v683 = vpop.permute.xlu0 %682
  %684 = vrot.lane.b32.xlu0 %v648, 32
  %v685 = vpop.permute.xlu0 %684
  %686 = vrot.lane.b32.xlu0 %v655, 32
  %v687 = vpop.permute.xlu0 %686
  %vm704 = vcmask 517376
  %705 = vst.msk [vmem:[#allocation2] sm:$0x3] %vm704, %v657
  %706 = vst.msk [vmem:[#allocation2 + $0x2] sm:$0x3] %vm704, %v659
  %707 = vst.msk [vmem:[#allocation2 + $0x4] sm:$0x3] %vm704, %v661
  %708 = vst.msk [vmem:[#allocation2 + $0x6] sm:$0x3] %vm704, %v663
  %709 = vst.msk [vmem:[#allocation2 + $0x8] sm:$0x3] %vm704, %v665
  %710 = vst.msk [vmem:[#allocation2 + $0xa] sm:$0x3] %vm704, %v667
  %711 = vst.msk [vmem:[#allocation2 + $0xc] sm:$0x3] %vm704, %v669
  %712 = vst.msk [vmem:[#allocation2 + $0xe] sm:$0x3] %vm704, %v671
  %713 = vst.msk [vmem:[#allocation2 + $0x10] sm:$0x3] %vm704, %v673
  %714 = vst.msk [vmem:[#allocation2 + $0x12] sm:$0x3] %vm704, %v675
  %715 = vst.msk [vmem:[#allocation2 + $0x14] sm:$0x3] %vm704, %v677
  %716 = vst.msk [vmem:[#allocation2 + $0x16] sm:$0x3] %vm704, %v679
  %717 = vst.msk [vmem:[#allocation2 + $0x18] sm:$0x3] %vm704, %v681
  %718 = vst.msk [vmem:[#allocation2 + $0x1a] sm:$0x3] %vm704, %v683
  %719 = vst.msk [vmem:[#allocation2 + $0x1c] sm:$0x3] %vm704, %v685
  %720 = vst.msk [vmem:[#allocation2 + $0x1e] sm:$0x3] %vm704, %v687
  %v725 = vcombine.high %v359, %v359
  %v727 = vunpack.c.l.s4 1983009808
  %v728 = vunpack.c.0.s8 %v727
  %v729 = vlaneseq
  %v730 = vshrl.u32 %v729, 7
  %v731 = vsub.s32 %v728, %v730
  %v732 = vrot.slane %v359, %v731
  %v734 = vunpack.c.l.s4 1983009808
  %v735 = vunpack.c.0.s8 %v734
  %v736 = vlaneseq
  %v737 = vshrl.u32 %v736, 7
  %v738 = vsub.s32 %v735, %v737
  %v739 = vrot.slane %v725, %v738
  %v740 = vcombine.high %v732, %v732
  %v741 = vcombine.high %v739, %v739
  %v742 = vcombine.high %v360, %v360
  %v744 = vunpack.c.l.s4 1983009808
  %v745 = vunpack.c.0.s8 %v744
  %v746 = vlaneseq
  %v747 = vshrl.u32 %v746, 7
  %v748 = vsub.s32 %v745, %v747
  %v749 = vrot.slane %v360, %v748
  %v751 = vunpack.c.l.s4 1983009808
  %v752 = vunpack.c.0.s8 %v751
  %v753 = vlaneseq
  %v754 = vshrl.u32 %v753, 7
  %v755 = vsub.s32 %v752, %v754
  %v756 = vrot.slane %v742, %v755
  %v757 = vcombine.high %v749, %v749
  %v758 = vcombine.high %v756, %v756
  %v759 = vcombine.high %v361, %v361
  %v761 = vunpack.c.l.s4 1983009808
  %v762 = vunpack.c.0.s8 %v761
  %v763 = vlaneseq
  %v764 = vshrl.u32 %v763, 7
  %v765 = vsub.s32 %v762, %v764
  %v766 = vrot.slane %v361, %v765
  %v768 = vunpack.c.l.s4 1983009808
  %v769 = vunpack.c.0.s8 %v768
  %v770 = vlaneseq
  %v771 = vshrl.u32 %v770, 7
  %v772 = vsub.s32 %v769, %v771
  %v773 = vrot.slane %v759, %v772
  %v774 = vcombine.high %v766, %v766
  %v775 = vcombine.high %v773, %v773
  %v776 = vcombine.high %v362, %v362
  %v778 = vunpack.c.l.s4 1983009808
  %v779 = vunpack.c.0.s8 %v778
  %v780 = vlaneseq
  %v781 = vshrl.u32 %v780, 7
  %v782 = vsub.s32 %v779, %v781
  %v783 = vrot.slane %v362, %v782
  %v785 = vunpack.c.l.s4 1983009808
  %v786 = vunpack.c.0.s8 %v785
  %v787 = vlaneseq
  %v788 = vshrl.u32 %v787, 7
  %v789 = vsub.s32 %v786, %v788
  %v790 = vrot.slane %v776, %v789
  %v791 = vcombine.high %v783, %v783
  %v792 = vcombine.high %v790, %v790
  %v794 = vunpack.c.l.s4 1983009808
  %v795 = vunpack.c.0.s8 %v794
  %v796 = vlaneseq
  %v797 = vshrl.u32 %v796, 7
  %v798 = vsub.s32 %v795, %v797
  %v799 = vrot.slane %v732, %v798
  %v801 = vunpack.c.l.s4 1983009808
  %v802 = vunpack.c.0.s8 %v801
  %v803 = vlaneseq
  %v804 = vshrl.u32 %v803, 7
  %v805 = vsub.s32 %v802, %v804
  %v806 = vrot.slane %v740, %v805
  %v808 = vunpack.c.l.s4 1983009808
  %v809 = vunpack.c.0.s8 %v808
  %v810 = vlaneseq
  %v811 = vshrl.u32 %v810, 7
  %v812 = vsub.s32 %v809, %v811
  %v813 = vrot.slane %v739, %v812
  %v815 = vunpack.c.l.s4 1983009808
  %v816 = vunpack.c.0.s8 %v815
  %v817 = vlaneseq
  %v818 = vshrl.u32 %v817, 7
  %v819 = vsub.s32 %v816, %v818
  %v820 = vrot.slane %v741, %v819
  %v822 = vunpack.c.l.s4 1983009808
  %v823 = vunpack.c.0.s8 %v822
  %v824 = vlaneseq
  %v825 = vshrl.u32 %v824, 7
  %v826 = vsub.s32 %v823, %v825
  %v827 = vrot.slane %v749, %v826
  %v829 = vunpack.c.l.s4 1983009808
  %v830 = vunpack.c.0.s8 %v829
  %v831 = vlaneseq
  %v832 = vshrl.u32 %v831, 7
  %v833 = vsub.s32 %v830, %v832
  %v834 = vrot.slane %v757, %v833
  %v836 = vunpack.c.l.s4 1983009808
  %v837 = vunpack.c.0.s8 %v836
  %v838 = vlaneseq
  %v839 = vshrl.u32 %v838, 7
  %v840 = vsub.s32 %v837, %v839
  %v841 = vrot.slane %v756, %v840
  %v843 = vunpack.c.l.s4 1983009808
  %v844 = vunpack.c.0.s8 %v843
  %v845 = vlaneseq
  %v846 = vshrl.u32 %v845, 7
  %v847 = vsub.s32 %v844, %v846
  %v848 = vrot.slane %v758, %v847
  %v850 = vunpack.c.l.s4 1983009808
  %v851 = vunpack.c.0.s8 %v850
  %v852 = vlaneseq
  %v853 = vshrl.u32 %v852, 7
  %v854 = vsub.s32 %v851, %v853
  %v855 = vrot.slane %v766, %v854
  %v857 = vunpack.c.l.s4 1983009808
  %v858 = vunpack.c.0.s8 %v857
  %v859 = vlaneseq
  %v860 = vshrl.u32 %v859, 7
  %v861 = vsub.s32 %v858, %v860
  %v862 = vrot.slane %v774, %v861
  %v864 = vunpack.c.l.s4 1983009808
  %v865 = vunpack.c.0.s8 %v864
  %v866 = vlaneseq
  %v867 = vshrl.u32 %v866, 7
  %v868 = vsub.s32 %v865, %v867
  %v869 = vrot.slane %v773, %v868
  %v871 = vunpack.c.l.s4 1983009808
  %v872 = vunpack.c.0.s8 %v871
  %v873 = vlaneseq
  %v874 = vshrl.u32 %v873, 7
  %v875 = vsub.s32 %v872, %v874
  %v876 = vrot.slane %v775, %v875
  %v878 = vunpack.c.l.s4 1983009808
  %v879 = vunpack.c.0.s8 %v878
  %v880 = vlaneseq
  %v881 = vshrl.u32 %v880, 7
  %v882 = vsub.s32 %v879, %v881
  %v883 = vrot.slane %v783, %v882
  %v885 = vunpack.c.l.s4 1983009808
  %v886 = vunpack.c.0.s8 %v885
  %v887 = vlaneseq
  %v888 = vshrl.u32 %v887, 7
  %v889 = vsub.s32 %v886, %v888
  %v890 = vrot.slane %v791, %v889
  %v892 = vunpack.c.l.s4 1983009808
  %v893 = vunpack.c.0.s8 %v892
  %v894 = vlaneseq
  %v895 = vshrl.u32 %v894, 7
  %v896 = vsub.s32 %v893, %v895
  %v897 = vrot.slane %v790, %v896
  %v899 = vunpack.c.l.s4 1983009808
  %v900 = vunpack.c.0.s8 %v899
  %v901 = vlaneseq
  %v902 = vshrl.u32 %v901, 7
  %v903 = vsub.s32 %v900, %v902
  %v904 = vrot.slane %v792, %v903
  %905 = vrot.lane.b32.xlu0 %v799, 64
  %v906 = vpop.permute.xlu0 %905
  %907 = vrot.lane.b32.xlu0 %v806, 64
  %v908 = vpop.permute.xlu0 %907
  %909 = vrot.lane.b32.xlu0 %v813, 64
  %v910 = vpop.permute.xlu0 %909
  %911 = vrot.lane.b32.xlu0 %v820, 64
  %v912 = vpop.permute.xlu0 %911
  %913 = vrot.lane.b32.xlu0 %v827, 64
  %v914 = vpop.permute.xlu0 %913
  %915 = vrot.lane.b32.xlu0 %v834, 64
  %v916 = vpop.permute.xlu0 %915
  %917 = vrot.lane.b32.xlu0 %v841, 64
  %v918 = vpop.permute.xlu0 %917
  %919 = vrot.lane.b32.xlu0 %v848, 64
  %v920 = vpop.permute.xlu0 %919
  %921 = vrot.lane.b32.xlu0 %v855, 64
  %v922 = vpop.permute.xlu0 %921
  %923 = vrot.lane.b32.xlu0 %v862, 64
  %v924 = vpop.permute.xlu0 %923
  %925 = vrot.lane.b32.xlu0 %v869, 64
  %v926 = vpop.permute.xlu0 %925
  %927 = vrot.lane.b32.xlu0 %v876, 64
  %v928 = vpop.permute.xlu0 %927
  %929 = vrot.lane.b32.xlu0 %v883, 64
  %v930 = vpop.permute.xlu0 %929
  %931 = vrot.lane.b32.xlu0 %v890, 64
  %v932 = vpop.permute.xlu0 %931
  %933 = vrot.lane.b32.xlu0 %v897, 64
  %v934 = vpop.permute.xlu0 %933
  %935 = vrot.lane.b32.xlu0 %v904, 64
  %v936 = vpop.permute.xlu0 %935
  %vm953 = vcmask 779776
  %954 = vst.msk [vmem:[#allocation2] sm:$0x3] %vm953, %v906
  %955 = vst.msk [vmem:[#allocation2 + $0x2] sm:$0x3] %vm953, %v908
  %956 = vst.msk [vmem:[#allocation2 + $0x4] sm:$0x3] %vm953, %v910
  %957 = vst.msk [vmem:[#allocation2 + $0x6] sm:$0x3] %vm953, %v912
  %958 = vst.msk [vmem:[#allocation2 + $0x8] sm:$0x3] %vm953, %v914
  %959 = vst.msk [vmem:[#allocation2 + $0xa] sm:$0x3] %vm953, %v916
  %960 = vst.msk [vmem:[#allocation2 + $0xc] sm:$0x3] %vm953, %v918
  %961 = vst.msk [vmem:[#allocation2 + $0xe] sm:$0x3] %vm953, %v920
  %962 = vst.msk [vmem:[#allocation2 + $0x10] sm:$0x3] %vm953, %v922
  %963 = vst.msk [vmem:[#allocation2 + $0x12] sm:$0x3] %vm953, %v924
  %964 = vst.msk [vmem:[#allocation2 + $0x14] sm:$0x3] %vm953, %v926
  %965 = vst.msk [vmem:[#allocation2 + $0x16] sm:$0x3] %vm953, %v928
  %966 = vst.msk [vmem:[#allocation2 + $0x18] sm:$0x3] %vm953, %v930
  %967 = vst.msk [vmem:[#allocation2 + $0x1a] sm:$0x3] %vm953, %v932
  %968 = vst.msk [vmem:[#allocation2 + $0x1c] sm:$0x3] %vm953, %v934
  %969 = vst.msk [vmem:[#allocation2 + $0x1e] sm:$0x3] %vm953, %v936
  %v974 = vcombine.high %v363, %v363
  %v976 = vunpack.c.l.s4 1983009808
  %v977 = vunpack.c.0.s8 %v976
  %v978 = vlaneseq
  %v979 = vshrl.u32 %v978, 7
  %v980 = vsub.s32 %v977, %v979
  %v981 = vrot.slane %v363, %v980
  %v983 = vunpack.c.l.s4 1983009808
  %v984 = vunpack.c.0.s8 %v983
  %v985 = vlaneseq
  %v986 = vshrl.u32 %v985, 7
  %v987 = vsub.s32 %v984, %v986
  %v988 = vrot.slane %v974, %v987
  %v989 = vcombine.high %v981, %v981
  %v990 = vcombine.high %v988, %v988
  %v991 = vcombine.high %v364, %v364
  %v993 = vunpack.c.l.s4 1983009808
  %v994 = vunpack.c.0.s8 %v993
  %v995 = vlaneseq
  %v996 = vshrl.u32 %v995, 7
  %v997 = vsub.s32 %v994, %v996
  %v998 = vrot.slane %v364, %v997
  %v1000 = vunpack.c.l.s4 1983009808
  %v1001 = vunpack.c.0.s8 %v1000
  %v1002 = vlaneseq
  %v1003 = vshrl.u32 %v1002, 7
  %v1004 = vsub.s32 %v1001, %v1003
  %v1005 = vrot.slane %v991, %v1004
  %v1006 = vcombine.high %v998, %v998
  %v1007 = vcombine.high %v1005, %v1005
  %v1008 = vcombine.high %v365, %v365
  %v1010 = vunpack.c.l.s4 1983009808
  %v1011 = vunpack.c.0.s8 %v1010
  %v1012 = vlaneseq
  %v1013 = vshrl.u32 %v1012, 7
  %v1014 = vsub.s32 %v1011, %v1013
  %v1015 = vrot.slane %v365, %v1014
  %v1017 = vunpack.c.l.s4 1983009808
  %v1018 = vunpack.c.0.s8 %v1017
  %v1019 = vlaneseq
  %v1020 = vshrl.u32 %v1019, 7
  %v1021 = vsub.s32 %v1018, %v1020
  %v1022 = vrot.slane %v1008, %v1021
  %v1023 = vcombine.high %v1015, %v1015
  %v1024 = vcombine.high %v1022, %v1022
  %v1025 = vcombine.high %v366, %v366
  %v1027 = vunpack.c.l.s4 1983009808
  %v1028 = vunpack.c.0.s8 %v1027
  %v1029 = vlaneseq
  %v1030 = vshrl.u32 %v1029, 7
  %v1031 = vsub.s32 %v1028, %v1030
  %v1032 = vrot.slane %v366, %v1031
  %v1034 = vunpack.c.l.s4 1983009808
  %v1035 = vunpack.c.0.s8 %v1034
  %v1036 = vlaneseq
  %v1037 = vshrl.u32 %v1036, 7
  %v1038 = vsub.s32 %v1035, %v1037
  %v1039 = vrot.slane %v1025, %v1038
  %v1040 = vcombine.high %v1032, %v1032
  %v1041 = vcombine.high %v1039, %v1039
  %v1043 = vunpack.c.l.s4 1983009808
  %v1044 = vunpack.c.0.s8 %v1043
  %v1045 = vlaneseq
  %v1046 = vshrl.u32 %v1045, 7
  %v1047 = vsub.s32 %v1044, %v1046
  %v1048 = vrot.slane %v981, %v1047
  %v1050 = vunpack.c.l.s4 1983009808
  %v1051 = vunpack.c.0.s8 %v1050
  %v1052 = vlaneseq
  %v1053 = vshrl.u32 %v1052, 7
  %v1054 = vsub.s32 %v1051, %v1053
  %v1055 = vrot.slane %v989, %v1054
  %v1057 = vunpack.c.l.s4 1983009808
  %v1058 = vunpack.c.0.s8 %v1057
  %v1059 = vlaneseq
  %v1060 = vshrl.u32 %v1059, 7
  %v1061 = vsub.s32 %v1058, %v1060
  %v1062 = vrot.slane %v988, %v1061
  %v1064 = vunpack.c.l.s4 1983009808
  %v1065 = vunpack.c.0.s8 %v1064
  %v1066 = vlaneseq
  %v1067 = vshrl.u32 %v1066, 7
  %v1068 = vsub.s32 %v1065, %v1067
  %v1069 = vrot.slane %v990, %v1068
  %v1071 = vunpack.c.l.s4 1983009808
  %v1072 = vunpack.c.0.s8 %v1071
  %v1073 = vlaneseq
  %v1074 = vshrl.u32 %v1073, 7
  %v1075 = vsub.s32 %v1072, %v1074
  %v1076 = vrot.slane %v998, %v1075
  %v1078 = vunpack.c.l.s4 1983009808
  %v1079 = vunpack.c.0.s8 %v1078
  %v1080 = vlaneseq
  %v1081 = vshrl.u32 %v1080, 7
  %v1082 = vsub.s32 %v1079, %v1081
  %v1083 = vrot.slane %v1006, %v1082
  %v1085 = vunpack.c.l.s4 1983009808
  %v1086 = vunpack.c.0.s8 %v1085
  %v1087 = vlaneseq
  %v1088 = vshrl.u32 %v1087, 7
  %v1089 = vsub.s32 %v1086, %v1088
  %v1090 = vrot.slane %v1005, %v1089
  %v1092 = vunpack.c.l.s4 1983009808
  %v1093 = vunpack.c.0.s8 %v1092
  %v1094 = vlaneseq
  %v1095 = vshrl.u32 %v1094, 7
  %v1096 = vsub.s32 %v1093, %v1095
  %v1097 = vrot.slane %v1007, %v1096
  %v1099 = vunpack.c.l.s4 1983009808
  %v1100 = vunpack.c.0.s8 %v1099
  %v1101 = vlaneseq
  %v1102 = vshrl.u32 %v1101, 7
  %v1103 = vsub.s32 %v1100, %v1102
  %v1104 = vrot.slane %v1015, %v1103
  %v1106 = vunpack.c.l.s4 1983009808
  %v1107 = vunpack.c.0.s8 %v1106
  %v1108 = vlaneseq
  %v1109 = vshrl.u32 %v1108, 7
  %v1110 = vsub.s32 %v1107, %v1109
  %v1111 = vrot.slane %v1023, %v1110
  %v1113 = vunpack.c.l.s4 1983009808
  %v1114 = vunpack.c.0.s8 %v1113
  %v1115 = vlaneseq
  %v1116 = vshrl.u32 %v1115, 7
  %v1117 = vsub.s32 %v1114, %v1116
  %v1118 = vrot.slane %v1022, %v1117
  %v1120 = vunpack.c.l.s4 1983009808
  %v1121 = vunpack.c.0.s8 %v1120
  %v1122 = vlaneseq
  %v1123 = vshrl.u32 %v1122, 7
  %v1124 = vsub.s32 %v1121, %v1123
  %v1125 = vrot.slane %v1024, %v1124
  %v1127 = vunpack.c.l.s4 1983009808
  %v1128 = vunpack.c.0.s8 %v1127
  %v1129 = vlaneseq
  %v1130 = vshrl.u32 %v1129, 7
  %v1131 = vsub.s32 %v1128, %v1130
  %v1132 = vrot.slane %v1032, %v1131
  %v1134 = vunpack.c.l.s4 1983009808
  %v1135 = vunpack.c.0.s8 %v1134
  %v1136 = vlaneseq
  %v1137 = vshrl.u32 %v1136, 7
  %v1138 = vsub.s32 %v1135, %v1137
  %v1139 = vrot.slane %v1040, %v1138
  %v1141 = vunpack.c.l.s4 1983009808
  %v1142 = vunpack.c.0.s8 %v1141
  %v1143 = vlaneseq
  %v1144 = vshrl.u32 %v1143, 7
  %v1145 = vsub.s32 %v1142, %v1144
  %v1146 = vrot.slane %v1039, %v1145
  %v1148 = vunpack.c.l.s4 1983009808
  %v1149 = vunpack.c.0.s8 %v1148
  %v1150 = vlaneseq
  %v1151 = vshrl.u32 %v1150, 7
  %v1152 = vsub.s32 %v1149, %v1151
  %v1153 = vrot.slane %v1041, %v1152
  %1154 = vrot.lane.b32.xlu0 %v1048, 96
  %v1155 = vpop.permute.xlu0 %1154
  %1156 = vrot.lane.b32.xlu0 %v1055, 96
  %v1157 = vpop.permute.xlu0 %1156
  %1158 = vrot.lane.b32.xlu0 %v1062, 96
  %v1159 = vpop.permute.xlu0 %1158
  %1160 = vrot.lane.b32.xlu0 %v1069, 96
  %v1161 = vpop.permute.xlu0 %1160
  %1162 = vrot.lane.b32.xlu0 %v1076, 96
  %v1163 = vpop.permute.xlu0 %1162
  %1164 = vrot.lane.b32.xlu0 %v1083, 96
  %v1165 = vpop.permute.xlu0 %1164
  %1166 = vrot.lane.b32.xlu0 %v1090, 96
  %v1167 = vpop.permute.xlu0 %1166
  %1168 = vrot.lane.b32.xlu0 %v1097, 96
  %v1169 = vpop.permute.xlu0 %1168
  %1170 = vrot.lane.b32.xlu0 %v1104, 96
  %v1171 = vpop.permute.xlu0 %1170
  %1172 = vrot.lane.b32.xlu0 %v1111, 96
  %v1173 = vpop.permute.xlu0 %1172
  %1174 = vrot.lane.b32.xlu0 %v1118, 96
  %v1175 = vpop.permute.xlu0 %1174
  %1176 = vrot.lane.b32.xlu0 %v1125, 96
  %v1177 = vpop.permute.xlu0 %1176
  %1178 = vrot.lane.b32.xlu0 %v1132, 96
  %v1179 = vpop.permute.xlu0 %1178
  %1180 = vrot.lane.b32.xlu0 %v1139, 96
  %v1181 = vpop.permute.xlu0 %1180
  %1182 = vrot.lane.b32.xlu0 %v1146, 96
  %v1183 = vpop.permute.xlu0 %1182
  %1184 = vrot.lane.b32.xlu0 %v1153, 96
  %v1185 = vpop.permute.xlu0 %1184
  %vm1202 = vcmask 1042176
  %1203 = vst.msk [vmem:[#allocation2] sm:$0x3] %vm1202, %v1155
  %1204 = vst.msk [vmem:[#allocation2 + $0x2] sm:$0x3] %vm1202, %v1157
  %1205 = vst.msk [vmem:[#allocation2 + $0x4] sm:$0x3] %vm1202, %v1159
  %1206 = vst.msk [vmem:[#allocation2 + $0x6] sm:$0x3] %vm1202, %v1161
  %1207 = vst.msk [vmem:[#allocation2 + $0x8] sm:$0x3] %vm1202, %v1163
  %1208 = vst.msk [vmem:[#allocation2 + $0xa] sm:$0x3] %vm1202, %v1165
  %1209 = vst.msk [vmem:[#allocation2 + $0xc] sm:$0x3] %vm1202, %v1167
  %1210 = vst.msk [vmem:[#allocation2 + $0xe] sm:$0x3] %vm1202, %v1169
  %1211 = vst.msk [vmem:[#allocation2 + $0x10] sm:$0x3] %vm1202, %v1171
  %1212 = vst.msk [vmem:[#allocation2 + $0x12] sm:$0x3] %vm1202, %v1173
  %1213 = vst.msk [vmem:[#allocation2 + $0x14] sm:$0x3] %vm1202, %v1175
  %1214 = vst.msk [vmem:[#allocation2 + $0x16] sm:$0x3] %vm1202, %v1177
  %1215 = vst.msk [vmem:[#allocation2 + $0x18] sm:$0x3] %vm1202, %v1179
  %1216 = vst.msk [vmem:[#allocation2 + $0x1a] sm:$0x3] %vm1202, %v1181
  %1217 = vst.msk [vmem:[#allocation2 + $0x1c] sm:$0x3] %vm1202, %v1183
  %1218 = vst.msk [vmem:[#allocation2 + $0x1e] sm:$0x3] %vm1202, %v1185
  %v1219 = vld [vmem:[%s5 + $0x70] sm:$0x2]
  %v1220 = vunpack.c.l.bf16 %v1219
  %v1221 = vld [vmem:[#allocation2] sm:$0x3]
  %v1222 = vld [vmem:[#allocation2 + $0x2] sm:$0x3]
  %v1223 = vld [vmem:[#allocation2 + $0x4] sm:$0x3]
  %v1224 = vld [vmem:[#allocation2 + $0x8] sm:$0x3]
  %v1225 = vld [vmem:[#allocation2 + $0xa] sm:$0x3]
  %v1226 = vld [vmem:[#allocation2 + $0xc] sm:$0x3]
  %v1227 = vld [vmem:[#allocation2 + $0x10] sm:$0x3]
  %v1228 = vld [vmem:[#allocation2 + $0x12] sm:$0x3]
  %v1229 = vld [vmem:[#allocation2 + $0x14] sm:$0x3]
  %v1239 = vcombine.low %v1221, %v1222
  %v1240 = vcombine.low %v1223, %v1224
  %v1242 = vunpack.c.l.s4 1983009808
  %v1243 = vunpack.c.0.s8 %v1242
  %v1244 = vlaneseq
  %v1245 = vshrl.u32 %v1244, 7
  %v1246 = vsub.s32 %v1243, %v1245
  %v1247 = vrot.slane %v1239, %v1246
  %v1249 = vunpack.c.l.s4 1983009808
  %v1250 = vunpack.c.0.s8 %v1249
  %v1251 = vlaneseq
  %v1252 = vshrl.u32 %v1251, 7
  %v1253 = vsub.s32 %v1250, %v1252
  %v1254 = vrot.slane %v1240, %v1253
  %v1255 = vcombine.low %v1247, %v1254
  %v1256 = vcombine.low %v1225, %v1226
  %v1257 = vcombine.low %v1227, %v1228
  %v1259 = vunpack.c.l.s4 1983009808
  %v1260 = vunpack.c.0.s8 %v1259
  %v1261 = vlaneseq
  %v1262 = vshrl.u32 %v1261, 7
  %v1263 = vsub.s32 %v1260, %v1262
  %v1264 = vrot.slane %v1256, %v1263
  %v1266 = vunpack.c.l.s4 1983009808
  %v1267 = vunpack.c.0.s8 %v1266
  %v1268 = vlaneseq
  %v1269 = vshrl.u32 %v1268, 7
  %v1270 = vsub.s32 %v1267, %v1269
  %v1271 = vrot.slane %v1257, %v1270
  %v1272 = vcombine.low %v1264, %v1271
  %v1274 = vunpack.c.l.s4 1983009808
  %v1275 = vunpack.c.0.s8 %v1274
  %v1276 = vlaneseq
  %v1277 = vshrl.u32 %v1276, 7
  %v1278 = vsub.s32 %v1275, %v1277
  %v1279 = vrot.slane %v1229, %v1278
  %v1283 = vpack.c.bf16 %v1272, %v1255
  %v1284 = vpack.c.bf16 %v1279, %v1279
  %v1285 = vld [vmem:[%s3] sm:$0xf]
  %v1286 = vld [vmem:[%s3 + $0x4] sm:$0xf]
  %v1287 = vld [vmem:[%s3 + $0x8] sm:$0xf]
  %v1288 = vld [vmem:[%s3 + $0xc] sm:$0xf]
  %v1289 = vld [vmem:[%s3 + $0x10] sm:$0xf]
  %v1290 = vld [vmem:[%s3 + $0x14] sm:$0xf]
  %v1291 = vld [vmem:[%s3 + $0x18] sm:$0xf]
  %v1292 = vld [vmem:[%s3 + $0x1c] sm:$0xf]
  %v1293 = vld [vmem:[%s3 + $0x20] sm:$0xf]
  %v1294 = vld [vmem:[%s3 + $0x24] sm:$0xf]
  %v1295 = vld [vmem:[%s3 + $0x28] sm:$0xf]
  %v1296 = vld [vmem:[%s3 + $0x2c] sm:$0xf]
  %v1297 = vld [vmem:[%s3 + $0x30] sm:$0xf]
  %v1298 = vld [vmem:[%s3 + $0x34] sm:$0xf]
  %v1299 = vld [vmem:[%s3 + $0x38] sm:$0xf]
  %v1300 = vld [vmem:[%s3 + $0x3c] sm:$0xf]
  %s1301 = scalar_lea.vmem [#allocation2], 2
  %v1302 = vld [vmem:[%s1301] sm:$0x3]
  %v1303 = vld [vmem:[%s1301 + $0x2] sm:$0x3]
  %v1304 = vld [vmem:[%s1301 + $0x4] sm:$0x3]
  %v1305 = vld [vmem:[%s1301 + $0x8] sm:$0x3]
  %v1306 = vld [vmem:[%s1301 + $0xa] sm:$0x3]
  %v1307 = vld [vmem:[%s1301 + $0xc] sm:$0x3]
  %v1308 = vld [vmem:[%s1301 + $0x10] sm:$0x3]
  %v1309 = vld [vmem:[%s1301 + $0x12] sm:$0x3]
  %v1310 = vld [vmem:[%s1301 + $0x14] sm:$0x3]
  %v1320 = vcombine.low %v1302, %v1303
  %v1321 = vcombine.low %v1304, %v1305
  %v1323 = vunpack.c.l.s4 1983009808
  %v1324 = vunpack.c.0.s8 %v1323
  %v1325 = vlaneseq
  %v1326 = vshrl.u32 %v1325, 7
  %v1327 = vsub.s32 %v1324, %v1326
  %v1328 = vrot.slane %v1320, %v1327
  %v1330 = vunpack.c.l.s4 1983009808
  %v1331 = vunpack.c.0.s8 %v1330
  %v1332 = vlaneseq
  %v1333 = vshrl.u32 %v1332, 7
  %v1334 = vsub.s32 %v1331, %v1333
  %v1335 = vrot.slane %v1321, %v1334
  %v1336 = vcombine.low %v1328, %v1335
  %v1337 = vcombine.low %v1306, %v1307
  %v1338 = vcombine.low %v1308, %v1309
  %v1340 = vunpack.c.l.s4 1983009808
  %v1341 = vunpack.c.0.s8 %v1340
  %v1342 = vlaneseq
  %v1343 = vshrl.u32 %v1342, 7
  %v1344 = vsub.s32 %v1341, %v1343
  %v1345 = vrot.slane %v1337, %v1344
  %v1347 = vunpack.c.l.s4 1983009808
  %v1348 = vunpack.c.0.s8 %v1347
  %v1349 = vlaneseq
  %v1350 = vshrl.u32 %v1349, 7
  %v1351 = vsub.s32 %v1348, %v1350
  %v1352 = vrot.slane %v1338, %v1351
  %v1353 = vcombine.low %v1345, %v1352
  %v1355 = vunpack.c.l.s4 1983009808
  %v1356 = vunpack.c.0.s8 %v1355
  %v1357 = vlaneseq
  %v1358 = vshrl.u32 %v1357, 7
  %v1359 = vsub.s32 %v1356, %v1358
  %v1360 = vrot.slane %v1310, %v1359
  %v1364 = vpack.c.bf16 %v1353, %v1336
  %v1365 = vpack.c.bf16 %v1360, %v1360
  %s1366 = scalar_lea.vmem %s3, 64
  %v1367 = vld [vmem:[%s1366] sm:$0xf]
  %v1368 = vld [vmem:[%s1366 + $0x4] sm:$0xf]
  %v1369 = vld [vmem:[%s1366 + $0x8] sm:$0xf]
  %v1370 = vld [vmem:[%s1366 + $0xc] sm:$0xf]
  %v1371 = vld [vmem:[%s1366 + $0x10] sm:$0xf]
  %v1372 = vld [vmem:[%s1366 + $0x14] sm:$0xf]
  %v1373 = vld [vmem:[%s1366 + $0x18] sm:$0xf]
  %v1374 = vld [vmem:[%s1366 + $0x1c] sm:$0xf]
  %v1375 = vld [vmem:[%s1366 + $0x20] sm:$0xf]
  %v1376 = vld [vmem:[%s1366 + $0x24] sm:$0xf]
  %v1377 = vld [vmem:[%s1366 + $0x28] sm:$0xf]
  %v1378 = vld [vmem:[%s1366 + $0x2c] sm:$0xf]
  %v1379 = vld [vmem:[%s1366 + $0x30] sm:$0xf]
  %v1380 = vld [vmem:[%s1366 + $0x34] sm:$0xf]
  %v1381 = vld [vmem:[%s1366 + $0x38] sm:$0xf]
  %v1382 = vld [vmem:[%s1366 + $0x3c] sm:$0xf]
  %v1399 = vunpack.c.l.b16 %v1367
  %v1400 = vunpack.c.l.b16 %v1368
  %v1401 = vunpack.c.l.b16 %v1369
  %v1402 = vunpack.c.l.b16 %v1370
  %v1403 = vunpack.c.l.b16 %v1371
  %v1404 = vunpack.c.l.b16 %v1372
  %v1405 = vunpack.c.l.b16 %v1373
  %v1406 = vunpack.c.l.b16 %v1374
  %v1407 = vunpack.c.l.b16 %v1375
  %v1408 = vunpack.c.l.b16 %v1376
  %v1409 = vunpack.c.l.b16 %v1377
  %v1410 = vunpack.c.l.b16 %v1378
  %v1411 = vunpack.c.l.b16 %v1379
  %v1412 = vunpack.c.l.b16 %v1380
  %v1413 = vunpack.c.l.b16 %v1381
  %v1414 = vunpack.c.l.b16 %v1382
  %v1415 = vpack.c.b16 %v1400, %v1399
  %v1416 = vpack.c.b16 %v1402, %v1401
  %v1417 = vpack.c.b16 %v1404, %v1403
  %v1418 = vpack.c.b16 %v1406, %v1405
  %v1419 = vpack.c.b16 %v1408, %v1407
  %v1420 = vpack.c.b16 %v1410, %v1409
  %v1421 = vpack.c.b16 %v1412, %v1411
  %v1422 = vpack.c.b16 %v1414, %v1413
  %1431 = vmatprep.subr.bf16.mxu0 0
  %1432 = vmatpush1.bf16.msra.mxu0 %v1422
  %1433 = vmatprep.subr.bf16.mxu0 0
  %1434 = vmatpush1.bf16.msra.mxu0 %v1421
  %1435 = vmatprep.subr.bf16.mxu0 0
  %1436 = vmatpush1.bf16.msra.mxu0 %v1420
  %1437 = vmatprep.subr.bf16.mxu0 0
  %1438 = vmatpush1.bf16.msra.mxu0 %v1419
  %1439 = vmatprep.subr.bf16.mxu0 0
  %1440 = vmatpush1.bf16.msra.mxu0 %v1418
  %1441 = vmatprep.subr.bf16.mxu0 0
  %1442 = vmatpush1.bf16.msra.mxu0 %v1417
  %1443 = vmatprep.subr.bf16.mxu0 0
  %1444 = vmatpush1.bf16.msra.mxu0 %v1416
  %1445 = vmatprep.subr.bf16.mxu0 0
  %1446 = vmatpush1.bf16.msra.mxu0 %v1415
  %1447 = vmatprep.subr.bf16.mxu0 0
  %1448 = vmatpush2.bf16.msra.mxu0 0
  %1449 = vmatprep.subr.bf16.mxu0 0
  %1450 = vmatpush2.bf16.msra.mxu0 0
  %1451 = vmatprep.subr.bf16.mxu0 0
  %1452 = vmatpush2.bf16.msra.mxu0 0
  %1453 = vmatprep.subr.bf16.mxu0 0
  %1454 = vmatpush2.bf16.msra.mxu0 0
  %1455 = vmatprep.subr.bf16.mxu0 0
  %1456 = vmatpush2.bf16.msra.mxu0 0
  %1457 = vmatprep.subr.bf16.mxu0 0
  %1458 = vmatpush2.bf16.msra.mxu0 0
  %1459 = vmatprep.subr.bf16.mxu0 0
  %1460 = vmatpush2.bf16.msra.mxu0 0
  %1461 = vmatprep.subr.bf16.mxu0 0
  %1462 = vmatpush2.bf16.msra.mxu0 0
  %1463 = vmatprep.mubr.bf16.mxu0 0
  %1464 = vmatmul.mubr.bf16.gmra.mxu0 %v1364
  %v1465 = vpop.f32.mrf.mxu0
  %v1466 = vadd.f32 0.0, %v1465
  %v1467 = vpop.f32.mrf.mxu0
  %v1468 = vpop.f32.mrf.mxu0
  %v1469 = vadd.f32 0.0, %v1468
  %v1470 = vpop.f32.mrf.mxu0
  %1471 = vmatprep.mubr.bf16.mxu0 0
  %1472 = vmatmul.mubr.bf16.gmra.mxu0 %v1365
  %v1473 = vpop.f32.mrf.mxu0
  %v1474 = vadd.f32 0.0, %v1473
  %v1475 = vpop.f32.mrf.mxu0
  %v1476 = vpop.f32.mrf.mxu0
  %v1477 = vpop.f32.mrf.mxu0
  %1478 = vdwg.mxu0
  %s1479 = scalar_lea.vmem [#allocation2], 8
  %v1480 = vld [vmem:[%s1479] sm:$0x3]
  %v1481 = vld [vmem:[%s1479 + $0x2] sm:$0x3]
  %v1482 = vld [vmem:[%s1479 + $0x4] sm:$0x3]
  %v1483 = vld [vmem:[%s1479 + $0x8] sm:$0x3]
  %v1484 = vld [vmem:[%s1479 + $0xa] sm:$0x3]
  %v1485 = vld [vmem:[%s1479 + $0xc] sm:$0x3]
  %v1486 = vld [vmem:[%s1479 + $0x10] sm:$0x3]
  %v1487 = vld [vmem:[%s1479 + $0x12] sm:$0x3]
  %v1488 = vld [vmem:[%s1479 + $0x14] sm:$0x3]
  %v1498 = vcombine.low %v1480, %v1481
  %v1499 = vcombine.low %v1482, %v1483
  %v1501 = vunpack.c.l.s4 1983009808
  %v1502 = vunpack.c.0.s8 %v1501
  %v1503 = vlaneseq
  %v1504 = vshrl.u32 %v1503, 7
  %v1505 = vsub.s32 %v1502, %v1504
  %v1506 = vrot.slane %v1498, %v1505
  %v1508 = vunpack.c.l.s4 1983009808
  %v1509 = vunpack.c.0.s8 %v1508
  %v1510 = vlaneseq
  %v1511 = vshrl.u32 %v1510, 7
  %v1512 = vsub.s32 %v1509, %v1511
  %v1513 = vrot.slane %v1499, %v1512
  %v1514 = vcombine.low %v1506, %v1513
  %v1515 = vcombine.low %v1484, %v1485
  %v1516 = vcombine.low %v1486, %v1487
  %v1518 = vunpack.c.l.s4 1983009808
  %v1519 = vunpack.c.0.s8 %v1518
  %v1520 = vlaneseq
  %v1521 = vshrl.u32 %v1520, 7
  %v1522 = vsub.s32 %v1519, %v1521
  %v1523 = vrot.slane %v1515, %v1522
  %v1525 = vunpack.c.l.s4 1983009808
  %v1526 = vunpack.c.0.s8 %v1525
  %v1527 = vlaneseq
  %v1528 = vshrl.u32 %v1527, 7
  %v1529 = vsub.s32 %v1526, %v1528
  %v1530 = vrot.slane %v1516, %v1529
  %v1531 = vcombine.low %v1523, %v1530
  %v1533 = vunpack.c.l.s4 1983009808
  %v1534 = vunpack.c.0.s8 %v1533
  %v1535 = vlaneseq
  %v1536 = vshrl.u32 %v1535, 7
  %v1537 = vsub.s32 %v1534, %v1536
  %v1538 = vrot.slane %v1488, %v1537
  %v1542 = vpack.c.bf16 %v1531, %v1514
  %v1543 = vpack.c.bf16 %v1538, %v1538
  %s1544 = scalar_lea.vmem %s3, 128
  %v1545 = vld [vmem:[%s1544] sm:$0xf]
  %v1546 = vld [vmem:[%s1544 + $0x4] sm:$0xf]
  %v1547 = vld [vmem:[%s1544 + $0x8] sm:$0xf]
  %v1548 = vld [vmem:[%s1544 + $0xc] sm:$0xf]
  %v1549 = vld [vmem:[%s1544 + $0x10] sm:$0xf]
  %v1550 = vld [vmem:[%s1544 + $0x14] sm:$0xf]
  %v1551 = vld [vmem:[%s1544 + $0x18] sm:$0xf]
  %v1552 = vld [vmem:[%s1544 + $0x1c] sm:$0xf]
  %v1553 = vld [vmem:[%s1544 + $0x20] sm:$0xf]
  %v1554 = vld [vmem:[%s1544 + $0x24] sm:$0xf]
  %v1555 = vld [vmem:[%s1544 + $0x28] sm:$0xf]
  %v1556 = vld [vmem:[%s1544 + $0x2c] sm:$0xf]
  %v1557 = vld [vmem:[%s1544 + $0x30] sm:$0xf]
  %v1558 = vld [vmem:[%s1544 + $0x34] sm:$0xf]
  %v1559 = vld [vmem:[%s1544 + $0x38] sm:$0xf]
  %v1560 = vld [vmem:[%s1544 + $0x3c] sm:$0xf]
  %s1561 = scalar_lea.vmem [#allocation2], 10
  %v1562 = vld [vmem:[%s1561] sm:$0x3]
  %v1563 = vld [vmem:[%s1561 + $0x2] sm:$0x3]
  %v1564 = vld [vmem:[%s1561 + $0x4] sm:$0x3]
  %v1565 = vld [vmem:[%s1561 + $0x8] sm:$0x3]
  %v1566 = vld [vmem:[%s1561 + $0xa] sm:$0x3]
  %v1567 = vld [vmem:[%s1561 + $0xc] sm:$0x3]
  %v1568 = vld [vmem:[%s1561 + $0x10] sm:$0x3]
  %v1569 = vld [vmem:[%s1561 + $0x12] sm:$0x3]
  %v1570 = vld [vmem:[%s1561 + $0x14] sm:$0x3]
  %v1580 = vcombine.low %v1562, %v1563
  %v1581 = vcombine.low %v1564, %v1565
  %v1583 = vunpack.c.l.s4 1983009808
  %v1584 = vunpack.c.0.s8 %v1583
  %v1585 = vlaneseq
  %v1586 = vshrl.u32 %v1585, 7
  %v1587 = vsub.s32 %v1584, %v1586
  %v1588 = vrot.slane %v1580, %v1587
  %v1590 = vunpack.c.l.s4 1983009808
  %v1591 = vunpack.c.0.s8 %v1590
  %v1592 = vlaneseq
  %v1593 = vshrl.u32 %v1592, 7
  %v1594 = vsub.s32 %v1591, %v1593
  %v1595 = vrot.slane %v1581, %v1594
  %v1596 = vcombine.low %v1588, %v1595
  %v1597 = vcombine.low %v1566, %v1567
  %v1598 = vcombine.low %v1568, %v1569
  %v1600 = vunpack.c.l.s4 1983009808
  %v1601 = vunpack.c.0.s8 %v1600
  %v1602 = vlaneseq
  %v1603 = vshrl.u32 %v1602, 7
  %v1604 = vsub.s32 %v1601, %v1603
  %v1605 = vrot.slane %v1597, %v1604
  %v1607 = vunpack.c.l.s4 1983009808
  %v1608 = vunpack.c.0.s8 %v1607
  %v1609 = vlaneseq
  %v1610 = vshrl.u32 %v1609, 7
  %v1611 = vsub.s32 %v1608, %v1610
  %v1612 = vrot.slane %v1598, %v1611
  %v1613 = vcombine.low %v1605, %v1612
  %v1615 = vunpack.c.l.s4 1983009808
  %v1616 = vunpack.c.0.s8 %v1615
  %v1617 = vlaneseq
  %v1618 = vshrl.u32 %v1617, 7
  %v1619 = vsub.s32 %v1616, %v1618
  %v1620 = vrot.slane %v1570, %v1619
  %v1624 = vpack.c.bf16 %v1613, %v1596
  %v1625 = vpack.c.bf16 %v1620, %v1620
  %s1626 = scalar_lea.vmem %s3, 192
  %v1627 = vld [vmem:[%s1626] sm:$0xf]
  %v1628 = vld [vmem:[%s1626 + $0x4] sm:$0xf]
  %v1629 = vld [vmem:[%s1626 + $0x8] sm:$0xf]
  %v1630 = vld [vmem:[%s1626 + $0xc] sm:$0xf]
  %v1631 = vld [vmem:[%s1626 + $0x10] sm:$0xf]
  %v1632 = vld [vmem:[%s1626 + $0x14] sm:$0xf]
  %v1633 = vld [vmem:[%s1626 + $0x18] sm:$0xf]
  %v1634 = vld [vmem:[%s1626 + $0x1c] sm:$0xf]
  %v1635 = vld [vmem:[%s1626 + $0x20] sm:$0xf]
  %v1636 = vld [vmem:[%s1626 + $0x24] sm:$0xf]
  %v1637 = vld [vmem:[%s1626 + $0x28] sm:$0xf]
  %v1638 = vld [vmem:[%s1626 + $0x2c] sm:$0xf]
  %v1639 = vld [vmem:[%s1626 + $0x30] sm:$0xf]
  %v1640 = vld [vmem:[%s1626 + $0x34] sm:$0xf]
  %v1641 = vld [vmem:[%s1626 + $0x38] sm:$0xf]
  %v1642 = vld [vmem:[%s1626 + $0x3c] sm:$0xf]
  %v1659 = vunpack.c.l.b16 %v1627
  %v1660 = vunpack.c.l.b16 %v1628
  %v1661 = vunpack.c.l.b16 %v1629
  %v1662 = vunpack.c.l.b16 %v1630
  %v1663 = vunpack.c.l.b16 %v1631
  %v1664 = vunpack.c.l.b16 %v1632
  %v1665 = vunpack.c.l.b16 %v1633
  %v1666 = vunpack.c.l.b16 %v1634
  %v1667 = vunpack.c.l.b16 %v1635
  %v1668 = vunpack.c.l.b16 %v1636
  %v1669 = vunpack.c.l.b16 %v1637
  %v1670 = vunpack.c.l.b16 %v1638
  %v1671 = vunpack.c.l.b16 %v1639
  %v1672 = vunpack.c.l.b16 %v1640
  %v1673 = vunpack.c.l.b16 %v1641
  %v1674 = vunpack.c.l.b16 %v1642
  %v1675 = vpack.c.b16 %v1660, %v1659
  %v1676 = vpack.c.b16 %v1662, %v1661
  %v1677 = vpack.c.b16 %v1664, %v1663
  %v1678 = vpack.c.b16 %v1666, %v1665
  %v1679 = vpack.c.b16 %v1668, %v1667
  %v1680 = vpack.c.b16 %v1670, %v1669
  %v1681 = vpack.c.b16 %v1672, %v1671
  %v1682 = vpack.c.b16 %v1674, %v1673
  %1691 = vmatprep.subr.bf16.mxu0 0
  %1692 = vmatpush1.bf16.msra.mxu0 %v1682
  %1693 = vmatprep.subr.bf16.mxu0 0
  %1694 = vmatpush1.bf16.msra.mxu0 %v1681
  %1695 = vmatprep.subr.bf16.mxu0 0
  %1696 = vmatpush1.bf16.msra.mxu0 %v1680
  %1697 = vmatprep.subr.bf16.mxu0 0
  %1698 = vmatpush1.bf16.msra.mxu0 %v1679
  %1699 = vmatprep.subr.bf16.mxu0 0
  %1700 = vmatpush1.bf16.msra.mxu0 %v1678
  %1701 = vmatprep.subr.bf16.mxu0 0
  %1702 = vmatpush1.bf16.msra.mxu0 %v1677
  %1703 = vmatprep.subr.bf16.mxu0 0
  %1704 = vmatpush1.bf16.msra.mxu0 %v1676
  %1705 = vmatprep.subr.bf16.mxu0 0
  %1706 = vmatpush1.bf16.msra.mxu0 %v1675
  %1707 = vmatprep.subr.bf16.mxu0 0
  %1708 = vmatpush2.bf16.msra.mxu0 0
  %1709 = vmatprep.subr.bf16.mxu0 0
  %1710 = vmatpush2.bf16.msra.mxu0 0
  %1711 = vmatprep.subr.bf16.mxu0 0
  %1712 = vmatpush2.bf16.msra.mxu0 0
  %1713 = vmatprep.subr.bf16.mxu0 0
  %1714 = vmatpush2.bf16.msra.mxu0 0
  %1715 = vmatprep.subr.bf16.mxu0 0
  %1716 = vmatpush2.bf16.msra.mxu0 0
  %1717 = vmatprep.subr.bf16.mxu0 0
  %1718 = vmatpush2.bf16.msra.mxu0 0
  %1719 = vmatprep.subr.bf16.mxu0 0
  %1720 = vmatpush2.bf16.msra.mxu0 0
  %1721 = vmatprep.subr.bf16.mxu0 0
  %1722 = vmatpush2.bf16.msra.mxu0 0
  %1723 = vmatprep.mubr.bf16.mxu0 0
  %1724 = vmatmul.mubr.bf16.gmra.mxu0 %v1624
  %v1725 = vpop.f32.mrf.mxu0
  %v1726 = vadd.f32 0.0, %v1725
  %v1727 = vpop.f32.mrf.mxu0
  %v1728 = vpop.f32.mrf.mxu0
  %v1729 = vadd.f32 0.0, %v1728
  %v1730 = vpop.f32.mrf.mxu0
  %1731 = vmatprep.mubr.bf16.mxu0 0
  %1732 = vmatmul.mubr.bf16.gmra.mxu0 %v1625
  %v1733 = vpop.f32.mrf.mxu0
  %v1734 = vadd.f32 0.0, %v1733
  %v1735 = vpop.f32.mrf.mxu0
  %v1736 = vpop.f32.mrf.mxu0
  %v1737 = vpop.f32.mrf.mxu0
  %1738 = vdwg.mxu0
  %v1755 = vunpack.c.l.b16 %v1285
  %v1756 = vunpack.c.l.b16 %v1286
  %v1757 = vunpack.c.l.b16 %v1287
  %v1758 = vunpack.c.l.b16 %v1288
  %v1759 = vunpack.c.l.b16 %v1289
  %v1760 = vunpack.c.l.b16 %v1290
  %v1761 = vunpack.c.l.b16 %v1291
  %v1762 = vunpack.c.l.b16 %v1292
  %v1763 = vunpack.c.l.b16 %v1293
  %v1764 = vunpack.c.l.b16 %v1294
  %v1765 = vunpack.c.l.b16 %v1295
  %v1766 = vunpack.c.l.b16 %v1296
  %v1767 = vunpack.c.l.b16 %v1297
  %v1768 = vunpack.c.l.b16 %v1298
  %v1769 = vunpack.c.l.b16 %v1299
  %v1770 = vunpack.c.l.b16 %v1300
  %v1771 = vpack.c.b16 %v1756, %v1755
  %v1772 = vpack.c.b16 %v1758, %v1757
  %v1773 = vpack.c.b16 %v1760, %v1759
  %v1774 = vpack.c.b16 %v1762, %v1761
  %v1775 = vpack.c.b16 %v1764, %v1763
  %v1776 = vpack.c.b16 %v1766, %v1765
  %v1777 = vpack.c.b16 %v1768, %v1767
  %v1778 = vpack.c.b16 %v1770, %v1769
  %1787 = vmatprep.subr.bf16.mxu0 0
  %1788 = vmatpush1.bf16.msra.mxu0 %v1778
  %1789 = vmatprep.subr.bf16.mxu0 0
  %1790 = vmatpush1.bf16.msra.mxu0 %v1777
  %1791 = vmatprep.subr.bf16.mxu0 0
  %1792 = vmatpush1.bf16.msra.mxu0 %v1776
  %1793 = vmatprep.subr.bf16.mxu0 0
  %1794 = vmatpush1.bf16.msra.mxu0 %v1775
  %1795 = vmatprep.subr.bf16.mxu0 0
  %1796 = vmatpush1.bf16.msra.mxu0 %v1774
  %1797 = vmatprep.subr.bf16.mxu0 0
  %1798 = vmatpush1.bf16.msra.mxu0 %v1773
  %1799 = vmatprep.subr.bf16.mxu0 0
  %1800 = vmatpush1.bf16.msra.mxu0 %v1772
  %1801 = vmatprep.subr.bf16.mxu0 0
  %1802 = vmatpush1.bf16.msra.mxu0 %v1771
  %1803 = vmatprep.subr.bf16.mxu0 0
  %1804 = vmatpush2.bf16.msra.mxu0 0
  %1805 = vmatprep.subr.bf16.mxu0 0
  %1806 = vmatpush2.bf16.msra.mxu0 0
  %1807 = vmatprep.subr.bf16.mxu0 0
  %1808 = vmatpush2.bf16.msra.mxu0 0
  %1809 = vmatprep.subr.bf16.mxu0 0
  %1810 = vmatpush2.bf16.msra.mxu0 0
  %1811 = vmatprep.subr.bf16.mxu0 0
  %1812 = vmatpush2.bf16.msra.mxu0 0
  %1813 = vmatprep.subr.bf16.mxu0 0
  %1814 = vmatpush2.bf16.msra.mxu0 0
  %1815 = vmatprep.subr.bf16.mxu0 0
  %1816 = vmatpush2.bf16.msra.mxu0 0
  %1817 = vmatprep.subr.bf16.mxu0 0
  %1818 = vmatpush2.bf16.msra.mxu0 0
  %1819 = vmatprep.mubr.bf16.mxu0 0
  %1820 = vmatmul.mubr.bf16.gmra.mxu0 %v1283
  %v1821 = vpop.f32.mrf.mxu0
  %v1822 = vadd.f32 %v1466, %v1821
  %v1823 = vpop.f32.mrf.mxu0
  %v1824 = vpop.f32.mrf.mxu0
  %v1825 = vadd.f32 %v1469, %v1824
  %v1826 = vpop.f32.mrf.mxu0
  %1827 = vmatprep.mubr.bf16.mxu0 0
  %1828 = vmatmul.mubr.bf16.gmra.mxu0 %v1284
  %v1829 = vpop.f32.mrf.mxu0
  %v1830 = vadd.f32 %v1474, %v1829
  %v1831 = vpop.f32.mrf.mxu0
  %v1832 = vpop.f32.mrf.mxu0
  %v1833 = vpop.f32.mrf.mxu0
  %1834 = vdwg.mxu0
  %v1851 = vunpack.c.l.b16 %v1545
  %v1852 = vunpack.c.l.b16 %v1546
  %v1853 = vunpack.c.l.b16 %v1547
  %v1854 = vunpack.c.l.b16 %v1548
  %v1855 = vunpack.c.l.b16 %v1549
  %v1856 = vunpack.c.l.b16 %v1550
  %v1857 = vunpack.c.l.b16 %v1551
  %v1858 = vunpack.c.l.b16 %v1552
  %v1859 = vunpack.c.l.b16 %v1553
  %v1860 = vunpack.c.l.b16 %v1554
  %v1861 = vunpack.c.l.b16 %v1555
  %v1862 = vunpack.c.l.b16 %v1556
  %v1863 = vunpack.c.l.b16 %v1557
  %v1864 = vunpack.c.l.b16 %v1558
  %v1865 = vunpack.c.l.b16 %v1559
  %v1866 = vunpack.c.l.b16 %v1560
  %v1867 = vpack.c.b16 %v1852, %v1851
  %v1868 = vpack.c.b16 %v1854, %v1853
  %v1869 = vpack.c.b16 %v1856, %v1855
  %v1870 = vpack.c.b16 %v1858, %v1857
  %v1871 = vpack.c.b16 %v1860, %v1859
  %v1872 = vpack.c.b16 %v1862, %v1861
  %v1873 = vpack.c.b16 %v1864, %v1863
  %v1874 = vpack.c.b16 %v1866, %v1865
  %1883 = vmatprep.subr.bf16.mxu0 0
  %1884 = vmatpush1.bf16.msra.mxu0 %v1874
  %1885 = vmatprep.subr.bf16.mxu0 0
  %1886 = vmatpush1.bf16.msra.mxu0 %v1873
  %1887 = vmatprep.subr.bf16.mxu0 0
  %1888 = vmatpush1.bf16.msra.mxu0 %v1872
  %1889 = vmatprep.subr.bf16.mxu0 0
  %1890 = vmatpush1.bf16.msra.mxu0 %v1871
  %1891 = vmatprep.subr.bf16.mxu0 0
  %1892 = vmatpush1.bf16.msra.mxu0 %v1870
  %1893 = vmatprep.subr.bf16.mxu0 0
  %1894 = vmatpush1.bf16.msra.mxu0 %v1869
  %1895 = vmatprep.subr.bf16.mxu0 0
  %1896 = vmatpush1.bf16.msra.mxu0 %v1868
  %1897 = vmatprep.subr.bf16.mxu0 0
  %1898 = vmatpush1.bf16.msra.mxu0 %v1867
  %1899 = vmatprep.subr.bf16.mxu0 0
  %1900 = vmatpush2.bf16.msra.mxu0 0
  %1901 = vmatprep.subr.bf16.mxu0 0
  %1902 = vmatpush2.bf16.msra.mxu0 0
  %1903 = vmatprep.subr.bf16.mxu0 0
  %1904 = vmatpush2.bf16.msra.mxu0 0
  %1905 = vmatprep.subr.bf16.mxu0 0
  %1906 = vmatpush2.bf16.msra.mxu0 0
  %1907 = vmatprep.subr.bf16.mxu0 0
  %1908 = vmatpush2.bf16.msra.mxu0 0
  %1909 = vmatprep.subr.bf16.mxu0 0
  %1910 = vmatpush2.bf16.msra.mxu0 0
  %1911 = vmatprep.subr.bf16.mxu0 0
  %1912 = vmatpush2.bf16.msra.mxu0 0
  %1913 = vmatprep.subr.bf16.mxu0 0
  %1914 = vmatpush2.bf16.msra.mxu0 0
  %1915 = vmatprep.mubr.bf16.mxu0 0
  %1916 = vmatmul.mubr.bf16.gmra.mxu0 %v1542
  %v1917 = vpop.f32.mrf.mxu0
  %v1918 = vadd.f32 %v1726, %v1917
  %v1919 = vpop.f32.mrf.mxu0
  %v1920 = vpop.f32.mrf.mxu0
  %v1921 = vadd.f32 %v1729, %v1920
  %v1922 = vpop.f32.mrf.mxu0
  %1923 = vmatprep.mubr.bf16.mxu0 0
  %1924 = vmatmul.mubr.bf16.gmra.mxu0 %v1543
  %v1925 = vpop.f32.mrf.mxu0
  %v1926 = vadd.f32 %v1734, %v1925
  %v1927 = vpop.f32.mrf.mxu0
  %v1928 = vpop.f32.mrf.mxu0
  %v1929 = vpop.f32.mrf.mxu0
  %1930 = vdwg.mxu0
  %v1931 = vadd.f32 %v1822, %v1918
  %v1932 = vadd.f32 %v1825, %v1921
  %v1933 = vadd.f32 %v1830, %v1926
  %v1934 = vlaneseq
  %v1935 = vshrl.u32 %v1934, 7
  %v1936 = vsub.s32 3, %v1935
  %v1937 = vrot.slane %v1220, %v1936
  %1939 = vrot.lane.b32.xlu0 %v1937, 64
  %v1940 = vpop.permute.xlu0 %1939
  %v1942 = vadd.f32 %v1931, %v1940
  %v1943 = vadd.f32 %v1932, %v1940
  %v1944 = vadd.f32 %v1933, %v1940
  %v1945 = vmax.f32 %v1942, 0.0
  %v1946 = vmax.f32 %v1943, 0.0
  %v1947 = vmax.f32 %v1944, 0.0
  %vm1948 = vcmask 523264
  %1949 = vst.msk [vmem:[#allocation3] sm:$0xff] %vm1948, %v1945
  %1950 = vst.msk [vmem:[#allocation3 + $0x8] sm:$0xff] %vm1948, %v1946
  %vm1951 = vcmask 517120
  %1952 = vst.msk [vmem:[#allocation3 + $0x10] sm:$0x3] %vm1951, %v1947
  %v1953 = vld [vmem:[#allocation3] sm:$0x3]
  %1954 = vst.msk [vmem:[#allocation4] sm:$0x3] %vm1951, %v1953
  %v1955 = vld [vmem:[#allocation3 + $0x2] sm:$0x3]
  %v1958 = vunpack.c.l.s4 1983009808
  %v1959 = vunpack.c.0.s8 %v1958
  %v1960 = vlaneseq
  %v1961 = vshrl.u32 %v1960, 7
  %v1962 = vsub.s32 %v1959, %v1961
  %v1963 = vrot.slane %v1955, %v1962
  %1964 = vrot.lane.b32.xlu0 %v1963, 64
  %v1965 = vpop.permute.xlu0 %1964
  %vm1967 = vcmask 1041920
  %1968 = vst.msk [vmem:[#allocation4] sm:$0x3] %vm1967, %v1965
  %v1969 = vld [vmem:[#allocation3 + $0x4] sm:$0x3]
  %1970 = vst.msk [vmem:[#allocation4 + $0x2] sm:$0x3] %vm1951, %v1969
  %v1971 = vld [vmem:[#allocation3 + $0x6] sm:$0x3]
  %v1974 = vunpack.c.l.s4 1983009808
  %v1975 = vunpack.c.0.s8 %v1974
  %v1976 = vlaneseq
  %v1977 = vshrl.u32 %v1976, 7
  %v1978 = vsub.s32 %v1975, %v1977
  %v1979 = vrot.slane %v1971, %v1978
  %1980 = vrot.lane.b32.xlu0 %v1979, 64
  %v1981 = vpop.permute.xlu0 %1980
  %1983 = vst.msk [vmem:[#allocation4 + $0x2] sm:$0x3] %vm1967, %v1981
  %v1984 = vld [vmem:[#allocation3 + $0x8] sm:$0x3]
  %1985 = vst.msk [vmem:[#allocation4 + $0x4] sm:$0x3] %vm1951, %v1984
  %v1986 = vld [vmem:[#allocation3 + $0xa] sm:$0x3]
  %v1989 = vunpack.c.l.s4 1983009808
  %v1990 = vunpack.c.0.s8 %v1989
  %v1991 = vlaneseq
  %v1992 = vshrl.u32 %v1991, 7
  %v1993 = vsub.s32 %v1990, %v1992
  %v1994 = vrot.slane %v1986, %v1993
  %1995 = vrot.lane.b32.xlu0 %v1994, 64
  %v1996 = vpop.permute.xlu0 %1995
  %1998 = vst.msk [vmem:[#allocation4 + $0x4] sm:$0x3] %vm1967, %v1996
  %v1999 = vld [vmem:[#allocation3 + $0xc] sm:$0x3]
  %2000 = vst.msk [vmem:[#allocation4 + $0x6] sm:$0x3] %vm1951, %v1999
  %v2001 = vld [vmem:[#allocation3 + $0xe] sm:$0x3]
  %v2004 = vunpack.c.l.s4 1983009808
  %v2005 = vunpack.c.0.s8 %v2004
  %v2006 = vlaneseq
  %v2007 = vshrl.u32 %v2006, 7
  %v2008 = vsub.s32 %v2005, %v2007
  %v2009 = vrot.slane %v2001, %v2008
  %2010 = vrot.lane.b32.xlu0 %v2009, 64
  %v2011 = vpop.permute.xlu0 %2010
  %2013 = vst.msk [vmem:[#allocation4 + $0x6] sm:$0x3] %vm1967, %v2011
  %v2014 = vld [vmem:[#allocation3 + $0x10] sm:$0x3]
  %2015 = vst.msk [vmem:[#allocation4 + $0x8] sm:$0x3] %vm1951, %v2014
  %v2016 = vld [vmem:[%s5 + $0x70] sm:$0x4]
  %v2017 = vunpack.c.l.bf16 %v2016
  %v2018 = vld [vmem:[#allocation4] sm:$0xff]
  %v2019 = vld [vmem:[#allocation4 + $0x8] sm:$0x3]
  %v2022 = vcombine.high %v2018, %v2018
  %v2024 = vunpack.c.l.s4 1983009808
  %v2025 = vunpack.c.0.s8 %v2024
  %v2026 = vlaneseq
  %v2027 = vshrl.u32 %v2026, 7
  %v2028 = vsub.s32 %v2025, %v2027
  %v2029 = vrot.slane %v2018, %v2028
  %v2031 = vunpack.c.l.s4 1983009808
  %v2032 = vunpack.c.0.s8 %v2031
  %v2033 = vlaneseq
  %v2034 = vshrl.u32 %v2033, 7
  %v2035 = vsub.s32 %v2032, %v2034
  %v2036 = vrot.slane %v2022, %v2035
  %v2037 = vcombine.high %v2029, %v2029
  %v2038 = vcombine.high %v2036, %v2036
  %v2040 = vunpack.c.l.s4 1983009808
  %v2041 = vunpack.c.0.s8 %v2040
  %v2042 = vlaneseq
  %v2043 = vshrl.u32 %v2042, 7
  %v2044 = vsub.s32 %v2041, %v2043
  %v2045 = vrot.slane %v2019, %v2044
  %v2051 = vpack.c.bf16 %v2029, %v2029
  %v2052 = vpack.c.bf16 %v2037, %v2037
  %v2053 = vpack.c.bf16 %v2036, %v2036
  %v2054 = vpack.c.bf16 %v2038, %v2038
  %v2055 = vpack.c.bf16 %v2045, %v2045
  %v2056 = vld [vmem:[%s4] sm:$0xf]
  %v2057 = vld [vmem:[%s4 + $0x4] sm:$0xf]
  %v2058 = vld [vmem:[%s4 + $0x8] sm:$0xf]
  %v2059 = vld [vmem:[%s4 + $0xc] sm:$0xf]
  %v2060 = vld [vmem:[%s4 + $0x10] sm:$0xf]
  %v2061 = vld [vmem:[%s4 + $0x14] sm:$0xf]
  %v2062 = vld [vmem:[%s4 + $0x18] sm:$0xf]
  %v2063 = vld [vmem:[%s4 + $0x1c] sm:$0xf]
  %v2064 = vld [vmem:[%s4 + $0x20] sm:$0xf]
  %v2065 = vld [vmem:[%s4 + $0x24] sm:$0xf]
  %v2066 = vld [vmem:[%s4 + $0x28] sm:$0xf]
  %v2067 = vld [vmem:[%s4 + $0x2c] sm:$0xf]
  %v2068 = vld [vmem:[%s4 + $0x30] sm:$0xf]
  %v2069 = vld [vmem:[%s4 + $0x34] sm:$0xf]
  %v2070 = vld [vmem:[%s4 + $0x38] sm:$0xf]
  %v2071 = vld [vmem:[%s4 + $0x3c] sm:$0xf]
  %v2072 = vld [vmem:[%s4 + $0x40] sm:$0xf]
  %v2073 = vld [vmem:[%s4 + $0x44] sm:$0xf]
  %v2074 = vld [vmem:[%s4 + $0x48] sm:$0xf]
  %v2075 = vld [vmem:[%s4 + $0x4c] sm:$0xf]
  %v2076 = vld [vmem:[%s4 + $0x50] sm:$0xf]
  %v2077 = vld [vmem:[%s4 + $0x54] sm:$0xf]
  %v2078 = vld [vmem:[%s4 + $0x58] sm:$0xf]
  %v2079 = vld [vmem:[%s4 + $0x5c] sm:$0xf]
  %v2080 = vld [vmem:[%s4 + $0x60] sm:$0xf]
  %v2081 = vld [vmem:[%s4 + $0x64] sm:$0xf]
  %v2082 = vld [vmem:[%s4 + $0x68] sm:$0xf]
  %v2083 = vld [vmem:[%s4 + $0x6c] sm:$0xf]
  %v2084 = vld [vmem:[%s4 + $0x70] sm:$0xf]
  %v2085 = vld [vmem:[%s4 + $0x74] sm:$0xf]
  %v2086 = vld [vmem:[%s4 + $0x78] sm:$0xf]
  %v2087 = vld [vmem:[%s4 + $0x7c] sm:$0xf]
  %v2088 = vld [vmem:[%s4 + $0x80] sm:$0xf]
  %v2089 = vld [vmem:[%s4 + $0x84] sm:$0xf]
  %v2090 = vld [vmem:[%s4 + $0x88] sm:$0xf]
  %v2091 = vld [vmem:[%s4 + $0x8c] sm:$0xf]
  %v2092 = vld [vmem:[%s4 + $0x90] sm:$0xf]
  %v2093 = vld [vmem:[%s4 + $0x94] sm:$0xf]
  %v2094 = vld [vmem:[%s4 + $0x98] sm:$0xf]
  %v2095 = vld [vmem:[%s4 + $0x9c] sm:$0xf]
  %v2096 = vld [vmem:[%s4 + $0xa0] sm:$0xf]
  %v2097 = vld [vmem:[%s4 + $0xa4] sm:$0xf]
  %v2098 = vld [vmem:[%s4 + $0xa8] sm:$0xf]
  %v2099 = vld [vmem:[%s4 + $0xac] sm:$0xf]
  %v2100 = vld [vmem:[%s4 + $0xb0] sm:$0xf]
  %v2101 = vld [vmem:[%s4 + $0xb4] sm:$0xf]
  %v2102 = vld [vmem:[%s4 + $0xb8] sm:$0xf]
  %v2103 = vld [vmem:[%s4 + $0xbc] sm:$0xf]
  %v2104 = vld [vmem:[%s4 + $0xc0] sm:$0xf]
  %v2105 = vld [vmem:[%s4 + $0xc4] sm:$0xf]
  %v2106 = vld [vmem:[%s4 + $0xc8] sm:$0xf]
  %v2107 = vld [vmem:[%s4 + $0xcc] sm:$0xf]
  %v2108 = vld [vmem:[%s4 + $0xd0] sm:$0xf]
  %v2109 = vld [vmem:[%s4 + $0xd4] sm:$0xf]
  %v2110 = vld [vmem:[%s4 + $0xd8] sm:$0xf]
  %v2111 = vld [vmem:[%s4 + $0xdc] sm:$0xf]
  %v2112 = vld [vmem:[%s4 + $0xe0] sm:$0xf]
  %v2113 = vld [vmem:[%s4 + $0xe4] sm:$0xf]
  %v2114 = vld [vmem:[%s4 + $0xe8] sm:$0xf]
  %v2115 = vld [vmem:[%s4 + $0xec] sm:$0xf]
  %v2116 = vld [vmem:[%s4 + $0xf0] sm:$0xf]
  %v2117 = vld [vmem:[%s4 + $0xf4] sm:$0xf]
  %v2118 = vld [vmem:[%s4 + $0xf8] sm:$0xf]
  %v2119 = vld [vmem:[%s4 + $0xfc] sm:$0xf]
  %v2120 = vld [vmem:[%s4 + $0x100] sm:$0xf]
  %v2121 = vld [vmem:[%s4 + $0x104] sm:$0xf]
  %v2122 = vld [vmem:[%s4 + $0x108] sm:$0xf]
  %v2123 = vld [vmem:[%s4 + $0x10c] sm:$0xf]
  %v2124 = vld [vmem:[%s4 + $0x110] sm:$0xf]
  %v2125 = vld [vmem:[%s4 + $0x114] sm:$0xf]
  %v2126 = vld [vmem:[%s4 + $0x118] sm:$0xf]
  %v2127 = vld [vmem:[%s4 + $0x11c] sm:$0xf]
  %v2128 = vlaneseq
  %v2129 = vshrl.u32 %v2128, 7
  %v2130 = vsub.s32 4, %v2129
  %v2131 = vrot.slane %v2017, %v2130
  %v2204 = vunpack.c.l.b16 %v2056
  %v2205 = vunpack.c.l.b16 %v2057
  %v2206 = vunpack.c.l.b16 %v2058
  %v2207 = vunpack.c.l.b16 %v2059
  %v2208 = vunpack.c.l.b16 %v2060
  %v2209 = vunpack.c.l.b16 %v2061
  %v2210 = vunpack.c.l.b16 %v2062
  %v2211 = vunpack.c.l.b16 %v2063
  %v2212 = vunpack.c.l.b16 %v2064
  %v2213 = vunpack.c.l.b16 %v2065
  %v2214 = vunpack.c.l.b16 %v2066
  %v2215 = vunpack.c.l.b16 %v2067
  %v2216 = vunpack.c.l.b16 %v2068
  %v2217 = vunpack.c.l.b16 %v2069
  %v2218 = vunpack.c.l.b16 %v2070
  %v2219 = vunpack.c.l.b16 %v2071
  %v2220 = vunpack.c.l.b16 %v2072
  %v2221 = vunpack.c.l.b16 %v2073
  %v2222 = vunpack.c.l.b16 %v2074
  %v2223 = vunpack.c.l.b16 %v2075
  %v2224 = vunpack.c.l.b16 %v2076
  %v2225 = vunpack.c.l.b16 %v2077
  %v2226 = vunpack.c.l.b16 %v2078
  %v2227 = vunpack.c.l.b16 %v2079
  %v2228 = vunpack.c.l.b16 %v2080
  %v2229 = vunpack.c.l.b16 %v2081
  %v2230 = vunpack.c.l.b16 %v2082
  %v2231 = vunpack.c.l.b16 %v2083
  %v2232 = vunpack.c.l.b16 %v2084
  %v2233 = vunpack.c.l.b16 %v2085
  %v2234 = vunpack.c.l.b16 %v2086
  %v2235 = vunpack.c.l.b16 %v2087
  %v2236 = vunpack.c.l.b16 %v2088
  %v2237 = vunpack.c.l.b16 %v2089
  %v2238 = vunpack.c.l.b16 %v2090
  %v2239 = vunpack.c.l.b16 %v2091
  %v2240 = vunpack.c.l.b16 %v2092
  %v2241 = vunpack.c.l.b16 %v2093
  %v2242 = vunpack.c.l.b16 %v2094
  %v2243 = vunpack.c.l.b16 %v2095
  %v2244 = vunpack.c.l.b16 %v2096
  %v2245 = vunpack.c.l.b16 %v2097
  %v2246 = vunpack.c.l.b16 %v2098
  %v2247 = vunpack.c.l.b16 %v2099
  %v2248 = vunpack.c.l.b16 %v2100
  %v2249 = vunpack.c.l.b16 %v2101
  %v2250 = vunpack.c.l.b16 %v2102
  %v2251 = vunpack.c.l.b16 %v2103
  %v2252 = vunpack.c.l.b16 %v2104
  %v2253 = vunpack.c.l.b16 %v2105
  %v2254 = vunpack.c.l.b16 %v2106
  %v2255 = vunpack.c.l.b16 %v2107
  %v2256 = vunpack.c.l.b16 %v2108
  %v2257 = vunpack.c.l.b16 %v2109
  %v2258 = vunpack.c.l.b16 %v2110
  %v2259 = vunpack.c.l.b16 %v2111
  %v2260 = vunpack.c.l.b16 %v2112
  %v2261 = vunpack.c.l.b16 %v2113
  %v2262 = vunpack.c.l.b16 %v2114
  %v2263 = vunpack.c.l.b16 %v2115
  %v2264 = vunpack.c.l.b16 %v2116
  %v2265 = vunpack.c.l.b16 %v2117
  %v2266 = vunpack.c.l.b16 %v2118
  %v2267 = vunpack.c.l.b16 %v2119
  %v2268 = vunpack.c.l.b16 %v2120
  %v2269 = vunpack.c.l.b16 %v2121
  %v2270 = vunpack.c.l.b16 %v2122
  %v2271 = vunpack.c.l.b16 %v2123
  %v2272 = vunpack.c.l.b16 %v2124
  %v2273 = vunpack.c.l.b16 %v2125
  %v2274 = vunpack.c.l.b16 %v2126
  %v2275 = vunpack.c.l.b16 %v2127
  %v2276 = vpack.c.b16 %v2205, %v2204
  %v2277 = vpack.c.b16 %v2207, %v2206
  %v2278 = vpack.c.b16 %v2209, %v2208
  %v2279 = vpack.c.b16 %v2211, %v2210
  %v2280 = vpack.c.b16 %v2213, %v2212
  %v2281 = vpack.c.b16 %v2215, %v2214
  %v2282 = vpack.c.b16 %v2217, %v2216
  %v2283 = vpack.c.b16 %v2219, %v2218
  %v2284 = vpack.c.b16 %v2221, %v2220
  %v2285 = vpack.c.b16 %v2223, %v2222
  %v2286 = vpack.c.b16 %v2225, %v2224
  %v2287 = vpack.c.b16 %v2227, %v2226
  %v2288 = vpack.c.b16 %v2229, %v2228
  %v2289 = vpack.c.b16 %v2231, %v2230
  %v2290 = vpack.c.b16 %v2233, %v2232
  %v2291 = vpack.c.b16 %v2235, %v2234
  %v2292 = vpack.c.b16 %v2237, %v2236
  %v2293 = vpack.c.b16 %v2239, %v2238
  %v2294 = vpack.c.b16 %v2241, %v2240
  %v2295 = vpack.c.b16 %v2243, %v2242
  %v2296 = vpack.c.b16 %v2245, %v2244
  %v2297 = vpack.c.b16 %v2247, %v2246
  %v2298 = vpack.c.b16 %v2249, %v2248
  %v2299 = vpack.c.b16 %v2251, %v2250
  %v2300 = vpack.c.b16 %v2253, %v2252
  %v2301 = vpack.c.b16 %v2255, %v2254
  %v2302 = vpack.c.b16 %v2257, %v2256
  %v2303 = vpack.c.b16 %v2259, %v2258
  %v2304 = vpack.c.b16 %v2261, %v2260
  %v2305 = vpack.c.b16 %v2263, %v2262
  %v2306 = vpack.c.b16 %v2265, %v2264
  %v2307 = vpack.c.b16 %v2267, %v2266
  %v2308 = vpack.c.b16 %v2269, %v2268
  %v2309 = vpack.c.b16 %v2271, %v2270
  %v2310 = vpack.c.b16 %v2273, %v2272
  %v2311 = vpack.c.b16 %v2275, %v2274
  %v2349 = vsel %vm1948, %v2055, 0
  %2351 = vmatprep.subr.bf16.mxu0 0
  %2352 = vmatpush1.bf16.msra.mxu0 %v2283
  %2353 = vmatprep.subr.bf16.mxu0 0
  %2354 = vmatpush1.bf16.msra.mxu0 %v2282
  %2355 = vmatprep.subr.bf16.mxu0 0
  %2356 = vmatpush1.bf16.msra.mxu0 %v2281
  %2357 = vmatprep.subr.bf16.mxu0 0
  %2358 = vmatpush1.bf16.msra.mxu0 %v2280
  %2359 = vmatprep.subr.bf16.mxu0 0
  %2360 = vmatpush1.bf16.msra.mxu0 %v2279
  %2361 = vmatprep.subr.bf16.mxu0 0
  %2362 = vmatpush1.bf16.msra.mxu0 %v2278
  %2363 = vmatprep.subr.bf16.mxu0 0
  %2364 = vmatpush1.bf16.msra.mxu0 %v2277
  %2365 = vmatprep.subr.bf16.mxu0 0
  %2366 = vmatpush1.bf16.msra.mxu0 %v2276
  %2367 = vmatprep.subr.bf16.mxu0 0
  %2368 = vmatpush2.bf16.msra.mxu0 %v2291
  %2369 = vmatprep.subr.bf16.mxu0 0
  %2370 = vmatpush2.bf16.msra.mxu0 %v2290
  %2371 = vmatprep.subr.bf16.mxu0 0
  %2372 = vmatpush2.bf16.msra.mxu0 %v2289
  %2373 = vmatprep.subr.bf16.mxu0 0
  %2374 = vmatpush2.bf16.msra.mxu0 %v2288
  %2375 = vmatprep.subr.bf16.mxu0 0
  %2376 = vmatpush2.bf16.msra.mxu0 %v2287
  %2377 = vmatprep.subr.bf16.mxu0 0
  %2378 = vmatpush2.bf16.msra.mxu0 %v2286
  %2379 = vmatprep.subr.bf16.mxu0 0
  %2380 = vmatpush2.bf16.msra.mxu0 %v2285
  %2381 = vmatprep.subr.bf16.mxu0 0
  %2382 = vmatpush2.bf16.msra.mxu0 %v2284
  %2383 = vmatprep.mubr.bf16.mxu0 %v2052
  %2384 = vmatmul.mubr.bf16.gmra.mxu0 %v2051
  %v2385 = vpop.f32.mrf.mxu0
  %v2386 = vadd.f32 %v2131, %v2385
  %v2387 = vpop.f32.mrf.mxu0
  %v2388 = vpop.f32.mrf.mxu0
  %v2389 = vpop.f32.mrf.mxu0
  %2390 = vdwg.mxu0
  %2391 = vmatprep.subr.bf16.mxu0 0
  %2392 = vmatpush1.bf16.msra.mxu0 %v2299
  %2393 = vmatprep.subr.bf16.mxu0 0
  %2394 = vmatpush1.bf16.msra.mxu0 %v2298
  %2395 = vmatprep.subr.bf16.mxu0 0
  %2396 = vmatpush1.bf16.msra.mxu0 %v2297
  %2397 = vmatprep.subr.bf16.mxu0 0
  %2398 = vmatpush1.bf16.msra.mxu0 %v2296
  %2399 = vmatprep.subr.bf16.mxu0 0
  %2400 = vmatpush1.bf16.msra.mxu0 %v2295
  %2401 = vmatprep.subr.bf16.mxu0 0
  %2402 = vmatpush1.bf16.msra.mxu0 %v2294
  %2403 = vmatprep.subr.bf16.mxu0 0
  %2404 = vmatpush1.bf16.msra.mxu0 %v2293
  %2405 = vmatprep.subr.bf16.mxu0 0
  %2406 = vmatpush1.bf16.msra.mxu0 %v2292
  %2407 = vmatprep.subr.bf16.mxu0 0
  %2408 = vmatpush2.bf16.msra.mxu0 %v2307
  %2409 = vmatprep.subr.bf16.mxu0 0
  %2410 = vmatpush2.bf16.msra.mxu0 %v2306
  %2411 = vmatprep.subr.bf16.mxu0 0
  %2412 = vmatpush2.bf16.msra.mxu0 %v2305
  %2413 = vmatprep.subr.bf16.mxu0 0
  %2414 = vmatpush2.bf16.msra.mxu0 %v2304
  %2415 = vmatprep.subr.bf16.mxu0 0
  %2416 = vmatpush2.bf16.msra.mxu0 %v2303
  %2417 = vmatprep.subr.bf16.mxu0 0
  %2418 = vmatpush2.bf16.msra.mxu0 %v2302
  %2419 = vmatprep.subr.bf16.mxu0 0
  %2420 = vmatpush2.bf16.msra.mxu0 %v2301
  %2421 = vmatprep.subr.bf16.mxu0 0
  %2422 = vmatpush2.bf16.msra.mxu0 %v2300
  %2423 = vmatprep.mubr.bf16.mxu0 %v2054
  %2424 = vmatmul.mubr.bf16.gmra.mxu0 %v2053
  %v2425 = vpop.f32.mrf.mxu0
  %v2426 = vadd.f32 %v2386, %v2425
  %v2427 = vpop.f32.mrf.mxu0
  %v2428 = vpop.f32.mrf.mxu0
  %v2429 = vpop.f32.mrf.mxu0
  %2430 = vdwg.mxu0
  %2431 = vmatprep.subr.bf16.mxu0 0
  %2432 = vmatpush1.bf16.msra.mxu0 0
  %2433 = vmatprep.subr.bf16.mxu0 0
  %2434 = vmatpush1.bf16.msra.mxu0 0
  %2435 = vmatprep.subr.bf16.mxu0 0
  %2436 = vmatpush1.bf16.msra.mxu0 0
  %2437 = vmatprep.subr.bf16.mxu0 0
  %2438 = vmatpush1.bf16.msra.mxu0 0
  %2439 = vmatprep.subr.bf16.mxu0 0
  %2440 = vmatpush1.bf16.msra.mxu0 %v2311
  %2441 = vmatprep.subr.bf16.mxu0 0
  %2442 = vmatpush1.bf16.msra.mxu0 %v2310
  %2443 = vmatprep.subr.bf16.mxu0 0
  %2444 = vmatpush1.bf16.msra.mxu0 %v2309
  %2445 = vmatprep.subr.bf16.mxu0 0
  %2446 = vmatpush1.bf16.msra.mxu0 %v2308
  %2447 = vmatprep.subr.bf16.mxu0 0
  %2448 = vmatpush2.bf16.msra.mxu0 0
  %2449 = vmatprep.subr.bf16.mxu0 0
  %2450 = vmatpush2.bf16.msra.mxu0 0
  %2451 = vmatprep.subr.bf16.mxu0 0
  %2452 = vmatpush2.bf16.msra.mxu0 0
  %2453 = vmatprep.subr.bf16.mxu0 0
  %2454 = vmatpush2.bf16.msra.mxu0 0
  %2455 = vmatprep.subr.bf16.mxu0 0
  %2456 = vmatpush2.bf16.msra.mxu0 0
  %2457 = vmatprep.subr.bf16.mxu0 0
  %2458 = vmatpush2.bf16.msra.mxu0 0
  %2459 = vmatprep.subr.bf16.mxu0 0
  %2460 = vmatpush2.bf16.msra.mxu0 0
  %2461 = vmatprep.subr.bf16.mxu0 0
  %2462 = vmatpush2.bf16.msra.mxu0 0
  %2463 = vmatprep.mubr.bf16.mxu0 0
  %2464 = vmatmul.mubr.bf16.gmra.mxu0 %v2349
  %v2465 = vpop.f32.mrf.mxu0
  %v2466 = vadd.f32 %v2426, %v2465
  %v2467 = vpop.f32.mrf.mxu0
  %v2468 = vpop.f32.mrf.mxu0
  %v2469 = vpop.f32.mrf.mxu0
  %2470 = vdwg.mxu0
  %v2471 = vmax.f32 %v2466, 0.0
  %v2472 = vld [vmem:[%s1] sm:$0x3]
  %v2473 = vld [vmem:[%s5 + $0x70] sm:$0x1]
  %v2474 = vunpack.c.l.bf16 %v2473
  %v2475 = vpack.c.bf16 %v2471, %v2471
  %v2476 = vld [vmem:[%s5] sm:$0xf]
  %v2477 = vld [vmem:[%s5 + $0x4] sm:$0xf]
  %v2478 = vld [vmem:[%s5 + $0x8] sm:$0xf]
  %v2479 = vld [vmem:[%s5 + $0xc] sm:$0xf]
  %v2480 = vld [vmem:[%s5 + $0x10] sm:$0xf]
  %v2481 = vld [vmem:[%s5 + $0x14] sm:$0xf]
  %v2482 = vld [vmem:[%s5 + $0x18] sm:$0xf]
  %v2483 = vld [vmem:[%s5 + $0x1c] sm:$0xf]
  %v2484 = vpack.c.bf16 %v2472, %v2472
  %v2485 = vld [vmem:[%s5 + $0x20] sm:$0xf]
  %v2486 = vld [vmem:[%s5 + $0x24] sm:$0xf]
  %v2487 = vld [vmem:[%s5 + $0x28] sm:$0xf]
  %v2488 = vld [vmem:[%s5 + $0x2c] sm:$0xf]
  %v2493 = vunpack.c.l.b16 %v2485
  %v2494 = vunpack.c.l.b16 %v2486
  %v2495 = vunpack.c.l.b16 %v2487
  %v2496 = vunpack.c.l.b16 %v2488
  %v2497 = vpack.c.b16 %v2494, %v2493
  %v2498 = vpack.c.b16 %v2496, %v2495
  %vm2501 = vcmask 261120
  %v2503 = vsel %vm2501, %v2484, 0
  %2505 = vmatprep.subr.bf16.mxu0 0
  %2506 = vmatpush1.bf16.msra.mxu0 0
  %2507 = vmatprep.subr.bf16.mxu0 0
  %2508 = vmatpush1.bf16.msra.mxu0 0
  %2509 = vmatprep.subr.bf16.mxu0 0
  %2510 = vmatpush1.bf16.msra.mxu0 0
  %2511 = vmatprep.subr.bf16.mxu0 0
  %2512 = vmatpush1.bf16.msra.mxu0 0
  %2513 = vmatprep.subr.bf16.mxu0 0
  %2514 = vmatpush1.bf16.msra.mxu0 0
  %2515 = vmatprep.subr.bf16.mxu0 0
  %2516 = vmatpush1.bf16.msra.mxu0 0
  %2517 = vmatprep.subr.bf16.mxu0 0
  %2518 = vmatpush1.bf16.msra.mxu0 %v2498
  %2519 = vmatprep.subr.bf16.mxu0 0
  %2520 = vmatpush1.bf16.msra.mxu0 %v2497
  %2521 = vmatprep.subr.bf16.mxu0 0
  %2522 = vmatpush2.bf16.msra.mxu0 0
  %2523 = vmatprep.subr.bf16.mxu0 0
  %2524 = vmatpush2.bf16.msra.mxu0 0
  %2525 = vmatprep.subr.bf16.mxu0 0
  %2526 = vmatpush2.bf16.msra.mxu0 0
  %2527 = vmatprep.subr.bf16.mxu0 0
  %2528 = vmatpush2.bf16.msra.mxu0 0
  %2529 = vmatprep.subr.bf16.mxu0 0
  %2530 = vmatpush2.bf16.msra.mxu0 0
  %2531 = vmatprep.subr.bf16.mxu0 0
  %2532 = vmatpush2.bf16.msra.mxu0 0
  %2533 = vmatprep.subr.bf16.mxu0 0
  %2534 = vmatpush2.bf16.msra.mxu0 0
  %2535 = vmatprep.subr.bf16.mxu0 0
  %2536 = vmatpush2.bf16.msra.mxu0 0
  %2537 = vmatprep.mubr.bf16.mxu0 0
  %2538 = vmatmul.mubr.bf16.gmra.mxu0 %v2503
  %v2539 = vpop.f32.mrf.mxu0
  %v2540 = vadd.f32 0.0, %v2539
  %v2541 = vpop.f32.mrf.mxu0
  %v2542 = vpop.f32.mrf.mxu0
  %v2543 = vpop.f32.mrf.mxu0
  %2544 = vdwg.mxu0
  %v2553 = vunpack.c.l.b16 %v2476
  %v2554 = vunpack.c.l.b16 %v2477
  %v2555 = vunpack.c.l.b16 %v2478
  %v2556 = vunpack.c.l.b16 %v2479
  %v2557 = vunpack.c.l.b16 %v2480
  %v2558 = vunpack.c.l.b16 %v2481
  %v2559 = vunpack.c.l.b16 %v2482
  %v2560 = vunpack.c.l.b16 %v2483
  %v2561 = vpack.c.b16 %v2554, %v2553
  %v2562 = vpack.c.b16 %v2556, %v2555
  %v2563 = vpack.c.b16 %v2558, %v2557
  %v2564 = vpack.c.b16 %v2560, %v2559
  %v2570 = vsel %vm1948, %v2475, 0
  %2572 = vmatprep.subr.bf16.mxu0 0
  %2573 = vmatpush1.bf16.msra.mxu0 0
  %2574 = vmatprep.subr.bf16.mxu0 0
  %2575 = vmatpush1.bf16.msra.mxu0 0
  %2576 = vmatprep.subr.bf16.mxu0 0
  %2577 = vmatpush1.bf16.msra.mxu0 0
  %2578 = vmatprep.subr.bf16.mxu0 0
  %2579 = vmatpush1.bf16.msra.mxu0 0
  %2580 = vmatprep.subr.bf16.mxu0 0
  %2581 = vmatpush1.bf16.msra.mxu0 %v2564
  %2582 = vmatprep.subr.bf16.mxu0 0
  %2583 = vmatpush1.bf16.msra.mxu0 %v2563
  %2584 = vmatprep.subr.bf16.mxu0 0
  %2585 = vmatpush1.bf16.msra.mxu0 %v2562
  %2586 = vmatprep.subr.bf16.mxu0 0
  %2587 = vmatpush1.bf16.msra.mxu0 %v2561
  %2588 = vmatprep.subr.bf16.mxu0 0
  %2589 = vmatpush2.bf16.msra.mxu0 0
  %2590 = vmatprep.subr.bf16.mxu0 0
  %2591 = vmatpush2.bf16.msra.mxu0 0
  %2592 = vmatprep.subr.bf16.mxu0 0
  %2593 = vmatpush2.bf16.msra.mxu0 0
  %2594 = vmatprep.subr.bf16.mxu0 0
  %2595 = vmatpush2.bf16.msra.mxu0 0
  %2596 = vmatprep.subr.bf16.mxu0 0
  %2597 = vmatpush2.bf16.msra.mxu0 0
  %2598 = vmatprep.subr.bf16.mxu0 0
  %2599 = vmatpush2.bf16.msra.mxu0 0
  %2600 = vmatprep.subr.bf16.mxu0 0
  %2601 = vmatpush2.bf16.msra.mxu0 0
  %2602 = vmatprep.subr.bf16.mxu0 0
  %2603 = vmatpush2.bf16.msra.mxu0 0
  %2604 = vmatprep.mubr.bf16.mxu0 0
  %2605 = vmatmul.mubr.bf16.gmra.mxu0 %v2570
  %v2606 = vpop.f32.mrf.mxu0
  %v2607 = vadd.f32 %v2540, %v2606
  %v2608 = vpop.f32.mrf.mxu0
  %v2609 = vpop.f32.mrf.mxu0
  %v2610 = vpop.f32.mrf.mxu0
  %2611 = vdwg.mxu0
  %v2612 = vlaneseq
  %v2613 = vshrl.u32 %v2612, 7
  %v2614 = vsub.s32 0, %v2613
  %v2615 = vrot.slane %v2474, %v2614
  %v2616 = vadd.f32 %v2607, %v2615
  %v2617 = vxor.u32 %v2616, 2147483648
  %v2618 = vmul.f32 %v2617, 1.442695
  %v2619 = vpow.pop %v2618
  %v2620 = vadd.f32 %v2619, 1.0
  %v2621 = vrcp.pop %v2620
  %v2622 = vmul.f32 1.0, %v2621
  %2624 = vrot.lane.b32.xlu0 %v2616, 32
  %v2625 = vpop.permute.xlu0 %2624
  %v2627 = vmul.f32 %v2622, %v2625
  %2629 = vrot.lane.b32.xlu0 %v2627, 64
  %v2630 = vpop.permute.xlu0 %2629
  %v2632 = vadd.f32 %v2616, %v2630
  %v2633 = vtanh.pop %v2632
  %v2634 = vsub.f32 1.0, %v2622
  %2636 = vrot.lane.b32.xlu0 %v2633, 96
  %v2637 = vpop.permute.xlu0 %2636
  %v2639 = vmul.f32 %v2634, %v2637
  %2641 = vrot.lane.b32.xlu0 %v2472, 32
  %v2642 = vpop.permute.xlu0 %2641
  %v2644 = vmul.f32 %v2622, %v2642
  %v2645 = vadd.f32 %v2639, %v2644
  %v2646 = vld [vmem:[%s5 + $0x70] sm:$0x2]
  %v2647 = vunpack.c.l.bf16 %v2646
  %v2648 = vpack.c.bf16 %v2645, %v2645
  %v2649 = vld [vmem:[%s5 + $0x50] sm:$0xf]
  %v2650 = vld [vmem:[%s5 + $0x54] sm:$0xf]
  %v2651 = vld [vmem:[%s5 + $0x58] sm:$0xf]
  %v2652 = vld [vmem:[%s5 + $0x5c] sm:$0xf]
  %v2653 = vlaneseq
  %v2654 = vshrl.u32 %v2653, 7
  %v2655 = vsub.s32 2, %v2654
  %v2656 = vrot.slane %v2647, %v2655
  %2658 = vrot.lane.b32.xlu0 %v2648, 96
  %v2659 = vpop.permute.xlu0 %2658
  %v2664 = vunpack.c.l.b16 %v2649
  %v2665 = vunpack.c.l.b16 %v2650
  %v2666 = vunpack.c.l.b16 %v2651
  %v2667 = vunpack.c.l.b16 %v2652
  %v2668 = vpack.c.b16 %v2665, %v2664
  %v2669 = vpack.c.b16 %v2667, %v2666
  %v2673 = vsel %vm2501, %v2659, 0
  %2675 = vmatprep.subr.bf16.mxu0 0
  %2676 = vmatpush1.bf16.msra.mxu0 0
  %2677 = vmatprep.subr.bf16.mxu0 0
  %2678 = vmatpush1.bf16.msra.mxu0 0
  %2679 = vmatprep.subr.bf16.mxu0 0
  %2680 = vmatpush1.bf16.msra.mxu0 0
  %2681 = vmatprep.subr.bf16.mxu0 0
  %2682 = vmatpush1.bf16.msra.mxu0 0
  %2683 = vmatprep.subr.bf16.mxu0 0
  %2684 = vmatpush1.bf16.msra.mxu0 0
  %2685 = vmatprep.subr.bf16.mxu0 0
  %2686 = vmatpush1.bf16.msra.mxu0 0
  %2687 = vmatprep.subr.bf16.mxu0 0
  %2688 = vmatpush1.bf16.msra.mxu0 %v2669
  %2689 = vmatprep.subr.bf16.mxu0 0
  %2690 = vmatpush1.bf16.msra.mxu0 %v2668
  %2691 = vmatprep.subr.bf16.mxu0 0
  %2692 = vmatpush2.bf16.msra.mxu0 0
  %2693 = vmatprep.subr.bf16.mxu0 0
  %2694 = vmatpush2.bf16.msra.mxu0 0
  %2695 = vmatprep.subr.bf16.mxu0 0
  %2696 = vmatpush2.bf16.msra.mxu0 0
  %2697 = vmatprep.subr.bf16.mxu0 0
  %2698 = vmatpush2.bf16.msra.mxu0 0
  %2699 = vmatprep.subr.bf16.mxu0 0
  %2700 = vmatpush2.bf16.msra.mxu0 0
  %2701 = vmatprep.subr.bf16.mxu0 0
  %2702 = vmatpush2.bf16.msra.mxu0 0
  %2703 = vmatprep.subr.bf16.mxu0 0
  %2704 = vmatpush2.bf16.msra.mxu0 0
  %2705 = vmatprep.subr.bf16.mxu0 0
  %2706 = vmatpush2.bf16.msra.mxu0 0
  %2707 = vmatprep.mubr.bf16.mxu0 0
  %2708 = vmatmul.mubr.bf16.gmra.mxu0 %v2673
  %v2709 = vpop.f32.mrf.mxu0
  %v2710 = vadd.f32 %v2656, %v2709
  %v2711 = vpop.f32.mrf.mxu0
  %v2712 = vpop.f32.mrf.mxu0
  %v2713 = vpop.f32.mrf.mxu0
  %2714 = vdwg.mxu0
  %v2715 = vmax.f32 %v2710, 0.0
  %v2716 = vpack.c.bf16 %v2715, %v2715
  %v2717 = vld [vmem:[%s5 + $0x60] sm:$0xf]
  %v2718 = vld [vmem:[%s5 + $0x64] sm:$0xf]
  %v2719 = vld [vmem:[%s5 + $0x68] sm:$0xf]
  %v2720 = vld [vmem:[%s5 + $0x6c] sm:$0xf]
  %v2725 = vunpack.c.l.b16 %v2717
  %v2726 = vunpack.c.l.b16 %v2718
  %v2727 = vunpack.c.l.b16 %v2719
  %v2728 = vunpack.c.l.b16 %v2720
  %v2729 = vpack.c.b16 %v2726, %v2725
  %v2730 = vpack.c.b16 %v2728, %v2727
  %2734 = vrot.lane.b32.xlu0 %v2656, 64
  %v2735 = vpop.permute.xlu0 %2734
  %v2738 = vsel %vm2501, %v2716, 0
  %2740 = vmatprep.subr.bf16.mxu0 0
  %2741 = vmatpush1.bf16.msra.mxu0 0
  %2742 = vmatprep.subr.bf16.mxu0 0
  %2743 = vmatpush1.bf16.msra.mxu0 0
  %2744 = vmatprep.subr.bf16.mxu0 0
  %2745 = vmatpush1.bf16.msra.mxu0 0
  %2746 = vmatprep.subr.bf16.mxu0 0
  %2747 = vmatpush1.bf16.msra.mxu0 0
  %2748 = vmatprep.subr.bf16.mxu0 0
  %2749 = vmatpush1.bf16.msra.mxu0 0
  %2750 = vmatprep.subr.bf16.mxu0 0
  %2751 = vmatpush1.bf16.msra.mxu0 0
  %2752 = vmatprep.subr.bf16.mxu0 0
  %2753 = vmatpush1.bf16.msra.mxu0 %v2730
  %2754 = vmatprep.subr.bf16.mxu0 0
  %2755 = vmatpush1.bf16.msra.mxu0 %v2729
  %2756 = vmatprep.subr.bf16.mxu0 0
  %2757 = vmatpush2.bf16.msra.mxu0 0
  %2758 = vmatprep.subr.bf16.mxu0 0
  %2759 = vmatpush2.bf16.msra.mxu0 0
  %2760 = vmatprep.subr.bf16.mxu0 0
  %2761 = vmatpush2.bf16.msra.mxu0 0
  %2762 = vmatprep.subr.bf16.mxu0 0
  %2763 = vmatpush2.bf16.msra.mxu0 0
  %2764 = vmatprep.subr.bf16.mxu0 0
  %2765 = vmatpush2.bf16.msra.mxu0 0
  %2766 = vmatprep.subr.bf16.mxu0 0
  %2767 = vmatpush2.bf16.msra.mxu0 0
  %2768 = vmatprep.subr.bf16.mxu0 0
  %2769 = vmatpush2.bf16.msra.mxu0 0
  %2770 = vmatprep.subr.bf16.mxu0 0
  %2771 = vmatpush2.bf16.msra.mxu0 0
  %2772 = vmatprep.mubr.bf16.mxu0 0
  %2773 = vmatmul.mubr.bf16.gmra.mxu0 %v2738
  %v2774 = vpop.f32.mrf.mxu0
  %v2775 = vadd.f32 %v2735, %v2774
  %v2776 = vpop.f32.mrf.mxu0
  %v2777 = vpop.f32.mrf.mxu0
  %v2778 = vpop.f32.mrf.mxu0
  %2779 = vdwg.mxu0
  %v2780 = vmax.f32 %v2775, 0.0
  %v2781 = vpack.c.bf16 %v2780, %v2780
  %v2782 = vld [vmem:[%s5 + $0x30] sm:$0xf]
  %v2783 = vld [vmem:[%s5 + $0x34] sm:$0xf]
  %v2784 = vld [vmem:[%s5 + $0x38] sm:$0xf]
  %v2785 = vld [vmem:[%s5 + $0x3c] sm:$0xf]
  %v2786 = vld [vmem:[%s5 + $0x40] sm:$0xf]
  %v2787 = vld [vmem:[%s5 + $0x44] sm:$0xf]
  %v2788 = vld [vmem:[%s5 + $0x48] sm:$0xf]
  %v2789 = vld [vmem:[%s5 + $0x4c] sm:$0xf]
  %v2790 = vlaneseq
  %v2791 = vshrl.u32 %v2790, 7
  %v2792 = vsub.s32 1, %v2791
  %v2793 = vrot.slane %v2474, %v2792
  %v2802 = vunpack.c.l.b16 %v2782
  %v2803 = vunpack.c.l.b16 %v2783
  %v2804 = vunpack.c.l.b16 %v2784
  %v2805 = vunpack.c.l.b16 %v2785
  %v2806 = vunpack.c.l.b16 %v2786
  %v2807 = vunpack.c.l.b16 %v2787
  %v2808 = vunpack.c.l.b16 %v2788
  %v2809 = vunpack.c.l.b16 %v2789
  %v2810 = vpack.c.b16 %v2803, %v2802
  %v2811 = vpack.c.b16 %v2805, %v2804
  %v2812 = vpack.c.b16 %v2807, %v2806
  %v2813 = vpack.c.b16 %v2809, %v2808
  %v2819 = vsel %vm1948, %v2781, 0
  %2821 = vmatprep.subr.bf16.mxu0 0
  %2822 = vmatpush1.bf16.msra.mxu0 0
  %2823 = vmatprep.subr.bf16.mxu0 0
  %2824 = vmatpush1.bf16.msra.mxu0 0
  %2825 = vmatprep.subr.bf16.mxu0 0
  %2826 = vmatpush1.bf16.msra.mxu0 0
  %2827 = vmatprep.subr.bf16.mxu0 0
  %2828 = vmatpush1.bf16.msra.mxu0 0
  %2829 = vmatprep.subr.bf16.mxu0 0
  %2830 = vmatpush1.bf16.msra.mxu0 %v2813
  %2831 = vmatprep.subr.bf16.mxu0 0
  %2832 = vmatpush1.bf16.msra.mxu0 %v2812
  %2833 = vmatprep.subr.bf16.mxu0 0
  %2834 = vmatpush1.bf16.msra.mxu0 %v2811
  %2835 = vmatprep.subr.bf16.mxu0 0
  %2836 = vmatpush1.bf16.msra.mxu0 %v2810
  %2837 = vmatprep.subr.bf16.mxu0 0
  %2838 = vmatpush2.bf16.msra.mxu0 0
  %2839 = vmatprep.subr.bf16.mxu0 0
  %2840 = vmatpush2.bf16.msra.mxu0 0
  %2841 = vmatprep.subr.bf16.mxu0 0
  %2842 = vmatpush2.bf16.msra.mxu0 0
  %2843 = vmatprep.subr.bf16.mxu0 0
  %2844 = vmatpush2.bf16.msra.mxu0 0
  %2845 = vmatprep.subr.bf16.mxu0 0
  %2846 = vmatpush2.bf16.msra.mxu0 0
  %2847 = vmatprep.subr.bf16.mxu0 0
  %2848 = vmatpush2.bf16.msra.mxu0 0
  %2849 = vmatprep.subr.bf16.mxu0 0
  %2850 = vmatpush2.bf16.msra.mxu0 0
  %2851 = vmatprep.subr.bf16.mxu0 0
  %2852 = vmatpush2.bf16.msra.mxu0 0
  %2853 = vmatprep.mubr.bf16.mxu0 0
  %2854 = vmatmul.mubr.bf16.gmra.mxu0 %v2819
  %v2855 = vpop.f32.mrf.mxu0
  %v2856 = vadd.f32 %v2793, %v2855
  %v2857 = vpop.f32.mrf.mxu0
  %v2858 = vpop.f32.mrf.mxu0
  %v2859 = vpop.f32.mrf.mxu0
  %2860 = vdwg.mxu0
  %2861 = vst [vmem:[%s6] sm:$0x3] %v2856
  %2863 = vrot.lane.b32.xlu0 %v2645, 32
  %v2864 = vpop.permute.xlu0 %2863
  %2866 = vst.msk [vmem:[%s6] sm:$0x3] %vm953, %v2864
  // Predicated region
  $region26: #{forward.1} parent=0 // pred_check
    _
  $region27: #{forward.1} parent=0 // pred_check_branch
    %2868 = sbr.rel (0) target = $region29
  $region28: #{forward.1} parent=0 // pred_region
    _
  $region29: #{forward.1} parent=0 // pred_fallthru
    _
  // Predicated region
  $region30: #{forward.1} parent=0 // pred_check
    _
  $region31: #{forward.1} parent=0 // pred_check_branch
    %2870 = sbr.rel (0) target = $region33
  $region32: #{forward.1} parent=0 // pred_region
    _
  $region33: #{forward.1} parent=0 // pred_fallthru
    _

</llo_original>
